<compile_context>
chip_gen: v7x
topology: tpu7x:2x2x1
jax: 0.10.0
libtpu: 0.0.40
codegen_flags: <defaults>
</compile_context>

<pallas_src>
import numpy as np
import jax
import jax.numpy as jnp
from jax.experimental import pallas as pl
from jax.experimental.pallas import tpu as pltpu

# ---------------- problem sizes (small, consistent with the module) ----------------
B = 2          # batch_size
S = 8          # seq_length  -> input_num_capsule (== f32 sublane count)
H = 32         # args.hidden_size -> input_dim_capsule
NC = 5         # num_capsule
DC = 10        # dim_capsule
ROUTINGS = 3
C = 31         # labels_num (Focal_Loss hard-codes 31 class frequencies)

NCDC = NC * DC     # 50
P = 128            # padded capsule lane width (NC*DC -> 128)
CP = 128           # padded class lane width   (C     -> 128)
LOSS_COL = CP - 1  # padded logits lane used to carry the per-example focal loss
NEG = -1e30        # logits padding via fc bias: vanishes under softmax (f32 only!)


def _make_kernel(bt):
    """Kernel for one batch tile of `bt` examples (bt*S sequence rows)."""
    bts = bt * S

    def kernel(x_ref, lab_ref, w_ref, fcw_ref, aux_ref, e_ref, et_ref, out_ref):
        f32 = jnp.float32
        E = e_ref[...]           # [NC, P]  expand per-capsule scalar -> its DC lanes
        ET = et_ref[...]         # [P, NC]  block-sum DC lanes -> per-capsule scalar

        # ---- u_hat = x @ W : one matmul for the whole batch tile ----------------
        u = jnp.dot(x_ref[...], w_ref[...], preferred_element_type=f32)   # [bts, P]

        # ---- dynamic routing, vectorized over (batch*seq, capsule) --------------
        b_log = jnp.zeros((bts, NC), f32)
        caps = None
        for it in range(ROUTINGS):
            # softmax over capsules; divide on the EUP (approx reciprocal)
            m = jnp.max(b_log, axis=1, keepdims=True)
            e = jnp.exp(b_log - m)
            c = e * pl.reciprocal(jnp.sum(e, axis=1, keepdims=True), approx=True)

            c_exp = jnp.dot(c, E, preferred_element_type=f32)              # [bts, P]
            # batch segment-sum over the S seq rows: tile-aligned reshape + reduce
            o = jnp.sum((c_exp * u).reshape(bt, S, P), axis=1)             # [bt, P]

            # squash per capsule block: o * rsqrt(sum(o^2) + 1e-7)
            norms = jnp.dot(o * o, ET, preferred_element_type=f32)         # [bt, NC]
            scale = jax.lax.rsqrt(norms + 1e-7)
            caps = o * jnp.dot(scale, E, preferred_element_type=f32)       # [bt, P]

            if it < ROUTINGS - 1:
                # broadcast per-batch caps back to its S seq rows (free sublane bcast)
                o_exp = jnp.broadcast_to(caps[:, None, :], (bt, S, P)).reshape(bts, P)
                b_log = jnp.dot(u * o_exp, ET, preferred_element_type=f32)  # [bts, NC]

        # ---- fc_capsule on flattened capsules (dropout1 = identity) -------------
        fcb = aux_ref[0:1, :]          # [1, CP]  (padded classes = NEG)
        alpha_row = aux_ref[1:2, :]    # [1, CP]  (padded classes = 0)
        logits = jnp.dot(caps, fcw_ref[...], preferred_element_type=f32) + fcb  # [bt, CP]

        # ---- focal loss (gamma=2) per example via log-softmax -------------------
        col_i = jax.lax.broadcasted_iota(jnp.int32, (bt, CP), 1)
        one_hot = (col_i == lab_ref[...]).astype(f32)                      # [bt, CP]

        mx = jnp.max(logits, axis=1, keepdims=True)                        # NEG never wins
        lse = jnp.log(jnp.sum(jnp.exp(logits - mx), axis=1, keepdims=True))
        logp_y = jnp.sum((logits - mx - lse) * one_hot, axis=1, keepdims=True)   # [bt, 1]
        prob = jnp.exp(logp_y)
        alpha_b = jnp.sum(alpha_row * one_hot, axis=1, keepdims=True)
        om = 1.0 - prob
        ex_loss = -alpha_b * om * om * logp_y                              # [bt, 1]

        # lane-dense store: real classes in cols [0,C), per-example loss in LOSS_COL
        out_ref[...] = jnp.where(col_i == LOSS_COL, ex_loss, logits)

    return kernel


def bert_capsule_forward(x, label, W_cap, fc_w, fc_b, alpha, *, batch_tile=None):
    """x: [B, S, H] f32 (encoder output), label: [B] int32. Returns (loss, logits)."""
    Bv, Sv, Hv = x.shape
    assert Sv == S and Hv == H
    f32 = jnp.float32

    # choose a batch tile: whole batch for small B; ~256 x-rows per step otherwise
    if batch_tile is None:
        batch_tile = Bv
        target = max(1, 256 // S)
        if Bv > target:
            for cand in range(target, 0, -1):
                if Bv % cand == 0 and cand % 8 == 0:
                    batch_tile = cand
                    break
    assert Bv % batch_tile == 0
    bt = batch_tile
    n_tiles = Bv // bt

    # host-side lane padding to 128; fc bias padded with NEG so padded classes vanish
    W_p = jnp.zeros((H, P), f32).at[:, :NCDC].set(W_cap)
    fcw_p = jnp.zeros((P, CP), f32).at[:NCDC, :C].set(fc_w)
    aux = jnp.full((2, CP), NEG, f32)            # row 0: fc bias, row 1: alpha
    aux = aux.at[1, :].set(0.0)
    aux = aux.at[0, :C].set(fc_b[0])
    aux = aux.at[1, :C].set(alpha[0])

    # capsule block-expansion constants, built once host-side
    e_np = np.zeros((NC, P), np.float32)
    for n in range(NC):
        e_np[n, n * DC:(n + 1) * DC] = 1.0
    E_in = jnp.asarray(e_np)                      # [NC, P]
    ET_in = jnp.asarray(e_np.T.copy())            # [P, NC]

    x2 = x.reshape(Bv * S, H)
    lab2 = label.reshape(Bv, 1).astype(jnp.int32)

    grid_spec = pltpu.PrefetchScalarGridSpec(
        num_scalar_prefetch=0,
        grid=(n_tiles,),                          # parallel batch-tile axis
        in_specs=[
            pl.BlockSpec((bt * S, H), lambda i: (i, 0)),   # x rows of this tile
            pl.BlockSpec((bt, 1), lambda i: (i, 0)),       # labels of this tile
            pl.BlockSpec((H, P), lambda i: (0, 0)),        # W_cap (constant)
            pl.BlockSpec((P, CP), lambda i: (0, 0)),       # fc weight (constant)
            pl.BlockSpec((2, CP), lambda i: (0, 0)),       # [fc bias; alpha]
            pl.BlockSpec((NC, P), lambda i: (0, 0)),       # E  (constant)
            pl.BlockSpec((P, NC), lambda i: (0, 0)),       # ET (constant)
        ],
        out_specs=pl.BlockSpec((bt, CP), lambda i: (i, 0)),
    )

    logits_p = pl.pallas_call(
        _make_kernel(bt),
        out_shape=jax.ShapeDtypeStruct((Bv, CP), f32),
        grid_spec=grid_spec,
        compiler_params=pltpu.CompilerParams(dimension_semantics=("parallel",)),
    )(x2, lab2, W_p, fcw_p, aux, E_in, ET_in)

    loss = jnp.sum(logits_p[:, LOSS_COL])         # per-example losses summed host-side
    return loss, logits_p[:, :C]


# --------------------------- pure-JAX reference -----------------------------------
def reference(x, label, W_cap, fc_w, fc_b, alpha):
    u = jnp.einsum('bsh,hd->bsd', x, W_cap)                       # [B,S,NC*DC]
    u = u.reshape(B, S, NC, DC).transpose(0, 2, 1, 3)             # [B,NC,S,DC]
    b = jnp.zeros((B, NC, S), jnp.float32)
    o = None
    for i in range(ROUTINGS):
        c = jax.nn.softmax(b, axis=1)
        o = jnp.einsum('bis,bisk->bik', c, u)
        o = o / jnp.sqrt(jnp.sum(o * o, axis=-1, keepdims=True) + 1e-7)
        if i < ROUTINGS - 1:
            b = jnp.einsum('bik,bisk->bis', o, u)
    caps = o.reshape(B, NC * DC)
    logits = caps @ fc_w + fc_b[0]
    Pm = jax.nn.softmax(logits, axis=1)
    onehot = jax.nn.one_hot(label, C, dtype=jnp.float32)
    probs = jnp.sum(Pm * onehot, axis=1)
    a = alpha[0][label]
    loss = jnp.sum(-a * (1.0 - probs) ** 2 * jnp.log(probs))
    return loss, logits


if __name__ == "__main__":
    key = jax.random.PRNGKey(0)
    k_x, k_w, k_fcw, k_fcb, k_lab = jax.random.split(key, 5)

    # encoder output stand-in (see TODO above)
    x = jax.random.normal(k_x, (B, S, H), dtype=jnp.float32)
    label = jax.random.randint(k_lab, (B,), 0, C, dtype=jnp.int32)

    # Capsule W: xavier_normal_-style init, shape [H, NC*DC] (shared weights, batch dim squeezed)
    std = float(np.sqrt(2.0 / (H + NCDC)))
    W_cap = jax.random.normal(k_w, (H, NCDC), dtype=jnp.float32) * std

    # fc_capsule: Linear(NC*DC, C); stored as [NC*DC, C] (= torch weight.T) plus bias [1, C]
    bound = float(1.0 / np.sqrt(NCDC))
    fc_w = jax.random.uniform(k_fcw, (NCDC, C), dtype=jnp.float32,
                              minval=-bound, maxval=bound)
    fc_b = jax.random.uniform(k_fcb, (1, C), dtype=jnp.float32,
                              minval=-bound, maxval=bound)

    # Focal_Loss class weights (exactly as in the module)
    num = [71, 32, 32, 32, 40, 358, 24, 32, 143, 83, 74, 32, 91, 32, 84, 88, 78,
           32, 136, 32, 45, 38, 95, 84, 94, 82, 94, 242, 88, 72, 609]
    total_num = float(sum(num))
    w1 = [total_num / ff for ff in num]
    s_ = sum(w1)
    alpha = jnp.asarray([ff / s_ for ff in w1], dtype=jnp.float32).reshape(1, C)

    loss, logits = bert_capsule_forward(x, label, W_cap, fc_w, fc_b, alpha)
    jax.block_until_ready((loss, logits))

    ref_loss, ref_logits = reference(x, label, W_cap, fc_w, fc_b, alpha)
    np.testing.assert_allclose(np.asarray(logits), np.asarray(ref_logits),
                               rtol=1e-3, atol=1e-3)
    np.testing.assert_allclose(np.asarray(loss), np.asarray(ref_loss),
                               rtol=1e-3, atol=1e-3)

    print("KERNEL_OK")
</pallas_src>

<mosaic_0001>
module attributes {stable_mosaic.version = 11 : i64} {
  func.func @kernel(%arg0: i32, %arg1: memref<16x32xf32, #tpu.memory_space<vmem>>, %arg2: memref<2x1xi32, #tpu.memory_space<vmem>>, %arg3: memref<32x128xf32, #tpu.memory_space<vmem>>, %arg4: memref<128x128xf32, #tpu.memory_space<vmem>>, %arg5: memref<2x128xf32, #tpu.memory_space<vmem>>, %arg6: memref<5x128xf32, #tpu.memory_space<vmem>>, %arg7: memref<128x5xf32, #tpu.memory_space<vmem>>, %arg8: memref<2x128xf32, #tpu.memory_space<vmem>>) attributes {dimension_semantics = [#tpu.dimension_semantics<parallel>], iteration_bounds = array<i64: 1>, scalar_prefetch = 0 : i64, scratch_operands = 0 : i64, tpu.core_type = #tpu.core_type<tc>, window_params = [{transform_indices = @transform_0, window_bounds = array<i64: 16, 32>}, {transform_indices = @transform_1, window_bounds = array<i64: 2, 1>}, {pipeline_mode = #tpu.pipeline_mode<synchronous>, transform_indices = @transform_2, window_bounds = array<i64: 32, 128>}, {pipeline_mode = #tpu.pipeline_mode<synchronous>, transform_indices = @transform_3, window_bounds = array<i64: 128, 128>}, {pipeline_mode = #tpu.pipeline_mode<synchronous>, transform_indices = @transform_4, window_bounds = array<i64: 2, 128>}, {pipeline_mode = #tpu.pipeline_mode<synchronous>, transform_indices = @transform_5, window_bounds = array<i64: 5, 128>}, {pipeline_mode = #tpu.pipeline_mode<synchronous>, transform_indices = @transform_6, window_bounds = array<i64: 128, 5>}, {transform_indices = @transform_7, window_bounds = array<i64: 2, 128>}]} {
    %c0 = arith.constant 0 : index
    %c0_0 = arith.constant 0 : index
    %0 = vector.load %arg6[%c0, %c0_0] : memref<5x128xf32, #tpu.memory_space<vmem>>, vector<5x128xf32>
    %c0_1 = arith.constant 0 : index
    %c0_2 = arith.constant 0 : index
    %1 = vector.load %arg7[%c0_1, %c0_2] : memref<128x5xf32, #tpu.memory_space<vmem>>, vector<128x5xf32>
    %c0_3 = arith.constant 0 : index
    %c0_4 = arith.constant 0 : index
    %2 = vector.load %arg1[%c0_3, %c0_4] : memref<16x32xf32, #tpu.memory_space<vmem>>, vector<16x32xf32>
    %c0_5 = arith.constant 0 : index
    %c0_6 = arith.constant 0 : index
    %3 = vector.load %arg3[%c0_5, %c0_6] : memref<32x128xf32, #tpu.memory_space<vmem>>, vector<32x128xf32>
    %cst = arith.constant dense<0.000000e+00> : vector<16x128xf32>
    %4 = tpu.matmul %2, %3, %cst {dimension_numbers = #tpu.dot_dimension_numbers<[1], [0], [0], [1], [0, 0, 1, 1], [], []>} : vector<16x32xf32>, vector<32x128xf32>, vector<16x128xf32> -> vector<16x128xf32>
    %cst_7 = arith.constant 0.000000e+00 : f32
    %5 = vector.broadcast %cst_7 : f32 to vector<16x5xf32>
    %cst_8 = arith.constant dense<0xFF800000> : vector<16xf32>
    %6 = vector.multi_reduction <maximumf>, %5, %cst_8 [1] : vector<16x5xf32> to vector<16xf32>
    %7 = vector.shape_cast %6 : vector<16xf32> to vector<16x1xf32>
    %8 = vector.broadcast %7 : vector<16x1xf32> to vector<16x5xf32>
    %9 = arith.subf %5, %8 : vector<16x5xf32>
    %10 = math.exp %9 : vector<16x5xf32>
    %cst_9 = arith.constant dense<0.000000e+00> : vector<16xf32>
    %11 = vector.multi_reduction <add>, %10, %cst_9 [1] : vector<16x5xf32> to vector<16xf32>
    %12 = vector.shape_cast %11 : vector<16xf32> to vector<16x1xf32>
    %13 = tpu.reciprocal %12 {approx = true} : vector<16x1xf32> -> vector<16x1xf32>
    %14 = vector.broadcast %13 : vector<16x1xf32> to vector<16x5xf32>
    %15 = arith.mulf %10, %14 : vector<16x5xf32>
    %cst_10 = arith.constant dense<0.000000e+00> : vector<16x128xf32>
    %16 = tpu.matmul %15, %0, %cst_10 {dimension_numbers = #tpu.dot_dimension_numbers<[1], [0], [0], [1], [0, 0, 1, 1], [], []>} : vector<16x5xf32>, vector<5x128xf32>, vector<16x128xf32> -> vector<16x128xf32>
    %17 = arith.mulf %16, %4 : vector<16x128xf32>
    %18 = vector.shape_cast %17 : vector<16x128xf32> to vector<2x8x128xf32>
    %cst_11 = arith.constant dense<0.000000e+00> : vector<2x128xf32>
    %19 = vector.multi_reduction <add>, %18, %cst_11 [1] : vector<2x8x128xf32> to vector<2x128xf32>
    %20 = arith.mulf %19, %19 : vector<2x128xf32>
    %cst_12 = arith.constant dense<0.000000e+00> : vector<2x5xf32>
    %21 = tpu.matmul %20, %1, %cst_12 {dimension_numbers = #tpu.dot_dimension_numbers<[1], [0], [0], [1], [0, 0, 1, 1], [], []>} : vector<2x128xf32>, vector<128x5xf32>, vector<2x5xf32> -> vector<2x5xf32>
    %cst_13 = arith.constant 1.000000e-07 : f32
    %22 = vector.broadcast %cst_13 : f32 to vector<2x5xf32>
    %23 = arith.addf %21, %22 : vector<2x5xf32>
    %24 = math.rsqrt %23 : vector<2x5xf32>
    %cst_14 = arith.constant dense<0.000000e+00> : vector<2x128xf32>
    %25 = tpu.matmul %24, %0, %cst_14 {dimension_numbers = #tpu.dot_dimension_numbers<[1], [0], [0], [1], [0, 0, 1, 1], [], []>} : vector<2x5xf32>, vector<5x128xf32>, vector<2x128xf32> -> vector<2x128xf32>
    %26 = arith.mulf %19, %25 : vector<2x128xf32>
    %27 = vector.shape_cast %26 : vector<2x128xf32> to vector<2x1x128xf32>
    %28 = vector.shape_cast %27 : vector<2x1x128xf32> to vector<2x1x128xf32>
    %29 = vector.broadcast %28 : vector<2x1x128xf32> to vector<2x8x128xf32>
    %30 = vector.shape_cast %29 : vector<2x8x128xf32> to vector<16x128xf32>
    %31 = arith.mulf %4, %30 : vector<16x128xf32>
    %cst_15 = arith.constant dense<0.000000e+00> : vector<16x5xf32>
    %32 = tpu.matmul %31, %1, %cst_15 {dimension_numbers = #tpu.dot_dimension_numbers<[1], [0], [0], [1], [0, 0, 1, 1], [], []>} : vector<16x128xf32>, vector<128x5xf32>, vector<16x5xf32> -> vector<16x5xf32>
    %cst_16 = arith.constant dense<0xFF800000> : vector<16xf32>
    %33 = vector.multi_reduction <maximumf>, %32, %cst_16 [1] : vector<16x5xf32> to vector<16xf32>
    %34 = vector.shape_cast %33 : vector<16xf32> to vector<16x1xf32>
    %35 = vector.broadcast %34 : vector<16x1xf32> to vector<16x5xf32>
    %36 = arith.subf %32, %35 : vector<16x5xf32>
    %37 = math.exp %36 : vector<16x5xf32>
    %cst_17 = arith.constant dense<0.000000e+00> : vector<16xf32>
    %38 = vector.multi_reduction <add>, %37, %cst_17 [1] : vector<16x5xf32> to vector<16xf32>
    %39 = vector.shape_cast %38 : vector<16xf32> to vector<16x1xf32>
    %40 = tpu.reciprocal %39 {approx = true} : vector<16x1xf32> -> vector<16x1xf32>
    %41 = vector.broadcast %40 : vector<16x1xf32> to vector<16x5xf32>
    %42 = arith.mulf %37, %41 : vector<16x5xf32>
    %cst_18 = arith.constant dense<0.000000e+00> : vector<16x128xf32>
    %43 = tpu.matmul %42, %0, %cst_18 {dimension_numbers = #tpu.dot_dimension_numbers<[1], [0], [0], [1], [0, 0, 1, 1], [], []>} : vector<16x5xf32>, vector<5x128xf32>, vector<16x128xf32> -> vector<16x128xf32>
    %44 = arith.mulf %43, %4 : vector<16x128xf32>
    %45 = vector.shape_cast %44 : vector<16x128xf32> to vector<2x8x128xf32>
    %cst_19 = arith.constant dense<0.000000e+00> : vector<2x128xf32>
    %46 = vector.multi_reduction <add>, %45, %cst_19 [1] : vector<2x8x128xf32> to vector<2x128xf32>
    %47 = arith.mulf %46, %46 : vector<2x128xf32>
    %cst_20 = arith.constant dense<0.000000e+00> : vector<2x5xf32>
    %48 = tpu.matmul %47, %1, %cst_20 {dimension_numbers = #tpu.dot_dimension_numbers<[1], [0], [0], [1], [0, 0, 1, 1], [], []>} : vector<2x128xf32>, vector<128x5xf32>, vector<2x5xf32> -> vector<2x5xf32>
    %cst_21 = arith.constant 1.000000e-07 : f32
    %49 = vector.broadcast %cst_21 : f32 to vector<2x5xf32>
    %50 = arith.addf %48, %49 : vector<2x5xf32>
    %51 = math.rsqrt %50 : vector<2x5xf32>
    %cst_22 = arith.constant dense<0.000000e+00> : vector<2x128xf32>
    %52 = tpu.matmul %51, %0, %cst_22 {dimension_numbers = #tpu.dot_dimension_numbers<[1], [0], [0], [1], [0, 0, 1, 1], [], []>} : vector<2x5xf32>, vector<5x128xf32>, vector<2x128xf32> -> vector<2x128xf32>
    %53 = arith.mulf %46, %52 : vector<2x128xf32>
    %54 = vector.shape_cast %53 : vector<2x128xf32> to vector<2x1x128xf32>
    %55 = vector.shape_cast %54 : vector<2x1x128xf32> to vector<2x1x128xf32>
    %56 = vector.broadcast %55 : vector<2x1x128xf32> to vector<2x8x128xf32>
    %57 = vector.shape_cast %56 : vector<2x8x128xf32> to vector<16x128xf32>
    %58 = arith.mulf %4, %57 : vector<16x128xf32>
    %cst_23 = arith.constant dense<0.000000e+00> : vector<16x5xf32>
    %59 = tpu.matmul %58, %1, %cst_23 {dimension_numbers = #tpu.dot_dimension_numbers<[1], [0], [0], [1], [0, 0, 1, 1], [], []>} : vector<16x128xf32>, vector<128x5xf32>, vector<16x5xf32> -> vector<16x5xf32>
    %cst_24 = arith.constant dense<0xFF800000> : vector<16xf32>
    %60 = vector.multi_reduction <maximumf>, %59, %cst_24 [1] : vector<16x5xf32> to vector<16xf32>
    %61 = vector.shape_cast %60 : vector<16xf32> to vector<16x1xf32>
    %62 = vector.broadcast %61 : vector<16x1xf32> to vector<16x5xf32>
    %63 = arith.subf %59, %62 : vector<16x5xf32>
    %64 = math.exp %63 : vector<16x5xf32>
    %cst_25 = arith.constant dense<0.000000e+00> : vector<16xf32>
    %65 = vector.multi_reduction <add>, %64, %cst_25 [1] : vector<16x5xf32> to vector<16xf32>
    %66 = vector.shape_cast %65 : vector<16xf32> to vector<16x1xf32>
    %67 = tpu.reciprocal %66 {approx = true} : vector<16x1xf32> -> vector<16x1xf32>
    %68 = vector.broadcast %67 : vector<16x1xf32> to vector<16x5xf32>
    %69 = arith.mulf %64, %68 : vector<16x5xf32>
    %cst_26 = arith.constant dense<0.000000e+00> : vector<16x128xf32>
    %70 = tpu.matmul %69, %0, %cst_26 {dimension_numbers = #tpu.dot_dimension_numbers<[1], [0], [0], [1], [0, 0, 1, 1], [], []>} : vector<16x5xf32>, vector<5x128xf32>, vector<16x128xf32> -> vector<16x128xf32>
    %71 = arith.mulf %70, %4 : vector<16x128xf32>
    %72 = vector.shape_cast %71 : vector<16x128xf32> to vector<2x8x128xf32>
    %cst_27 = arith.constant dense<0.000000e+00> : vector<2x128xf32>
    %73 = vector.multi_reduction <add>, %72, %cst_27 [1] : vector<2x8x128xf32> to vector<2x128xf32>
    %74 = arith.mulf %73, %73 : vector<2x128xf32>
    %cst_28 = arith.constant dense<0.000000e+00> : vector<2x5xf32>
    %75 = tpu.matmul %74, %1, %cst_28 {dimension_numbers = #tpu.dot_dimension_numbers<[1], [0], [0], [1], [0, 0, 1, 1], [], []>} : vector<2x128xf32>, vector<128x5xf32>, vector<2x5xf32> -> vector<2x5xf32>
    %cst_29 = arith.constant 1.000000e-07 : f32
    %76 = vector.broadcast %cst_29 : f32 to vector<2x5xf32>
    %77 = arith.addf %75, %76 : vector<2x5xf32>
    %78 = math.rsqrt %77 : vector<2x5xf32>
    %cst_30 = arith.constant dense<0.000000e+00> : vector<2x128xf32>
    %79 = tpu.matmul %78, %0, %cst_30 {dimension_numbers = #tpu.dot_dimension_numbers<[1], [0], [0], [1], [0, 0, 1, 1], [], []>} : vector<2x5xf32>, vector<5x128xf32>, vector<2x128xf32> -> vector<2x128xf32>
    %80 = arith.mulf %73, %79 : vector<2x128xf32>
    %c0_31 = arith.constant 0 : index
    %c0_32 = arith.constant 0 : index
    %81 = vector.load %arg5[%c0_31, %c0_32] : memref<2x128xf32, #tpu.memory_space<vmem>>, vector<1x128xf32>
    %c1 = arith.constant 1 : index
    %c0_33 = arith.constant 0 : index
    %82 = vector.load %arg5[%c1, %c0_33] : memref<2x128xf32, #tpu.memory_space<vmem>>, vector<1x128xf32>
    %c0_34 = arith.constant 0 : index
    %c0_35 = arith.constant 0 : index
    %83 = vector.load %arg4[%c0_34, %c0_35] : memref<128x128xf32, #tpu.memory_space<vmem>>, vector<128x128xf32>
    %cst_36 = arith.constant dense<0.000000e+00> : vector<2x128xf32>
    %84 = tpu.matmul %80, %83, %cst_36 {dimension_numbers = #tpu.dot_dimension_numbers<[1], [0], [0], [1], [0, 0, 1, 1], [], []>} : vector<2x128xf32>, vector<128x128xf32>, vector<2x128xf32> -> vector<2x128xf32>
    %85 = vector.broadcast %81 : vector<1x128xf32> to vector<2x128xf32>
    %86 = arith.addf %84, %85 : vector<2x128xf32>
    %87 = tpu.iota {dimensions = array<i32: 1>} : vector<2x128xi32>
    %c0_37 = arith.constant 0 : index
    %c0_38 = arith.constant 0 : index
    %88 = vector.load %arg2[%c0_37, %c0_38] : memref<2x1xi32, #tpu.memory_space<vmem>>, vector<2x1xi32>
    %89 = vector.broadcast %88 : vector<2x1xi32> to vector<2x128xi32>
    %90 = arith.cmpi eq, %87, %89 : vector<2x128xi32>
    %91 = arith.extui %90 : vector<2x128xi1> to vector<2x128xi32>
    %92 = arith.sitofp %91 : vector<2x128xi32> to vector<2x128xf32>
    %cst_39 = arith.constant dense<0xFF800000> : vector<2xf32>
    %93 = vector.multi_reduction <maximumf>, %86, %cst_39 [1] : vector<2x128xf32> to vector<2xf32>
    %94 = vector.shape_cast %93 : vector<2xf32> to vector<2x1xf32>
    %95 = vector.broadcast %94 : vector<2x1xf32> to vector<2x128xf32>
    %96 = arith.subf %86, %95 : vector<2x128xf32>
    %97 = math.exp %96 : vector<2x128xf32>
    %cst_40 = arith.constant dense<0.000000e+00> : vector<2xf32>
    %98 = vector.multi_reduction <add>, %97, %cst_40 [1] : vector<2x128xf32> to vector<2xf32>
    %99 = vector.shape_cast %98 : vector<2xf32> to vector<2x1xf32>
    %100 = math.log %99 : vector<2x1xf32>
    %101 = vector.broadcast %94 : vector<2x1xf32> to vector<2x128xf32>
    %102 = arith.subf %86, %101 : vector<2x128xf32>
    %103 = vector.broadcast %100 : vector<2x1xf32> to vector<2x128xf32>
    %104 = arith.subf %102, %103 : vector<2x128xf32>
    %105 = arith.mulf %104, %92 : vector<2x128xf32>
    %cst_41 = arith.constant dense<0.000000e+00> : vector<2xf32>
    %106 = vector.multi_reduction <add>, %105, %cst_41 [1] : vector<2x128xf32> to vector<2xf32>
    %107 = vector.shape_cast %106 : vector<2xf32> to vector<2x1xf32>
    %108 = math.exp %107 : vector<2x1xf32>
    %109 = vector.broadcast %82 : vector<1x128xf32> to vector<2x128xf32>
    %110 = arith.mulf %109, %92 : vector<2x128xf32>
    %cst_42 = arith.constant dense<0.000000e+00> : vector<2xf32>
    %111 = vector.multi_reduction <add>, %110, %cst_42 [1] : vector<2x128xf32> to vector<2xf32>
    %112 = vector.shape_cast %111 : vector<2xf32> to vector<2x1xf32>
    %cst_43 = arith.constant 1.000000e+00 : f32
    %113 = vector.broadcast %cst_43 : f32 to vector<2x1xf32>
    %114 = arith.subf %113, %108 : vector<2x1xf32>
    %cst_44 = arith.constant 0.000000e+00 : f32
    %115 = vector.broadcast %cst_44 : f32 to vector<2x1xf32>
    %116 = arith.subf %115, %112 : vector<2x1xf32>
    %117 = arith.mulf %116, %114 : vector<2x1xf32>
    %118 = arith.mulf %117, %114 : vector<2x1xf32>
    %119 = arith.mulf %118, %107 : vector<2x1xf32>
    %c127_i32 = arith.constant 127 : i32
    %120 = vector.broadcast %c127_i32 : i32 to vector<2x128xi32>
    %121 = arith.cmpi eq, %87, %120 : vector<2x128xi32>
    %122 = vector.shape_cast %119 : vector<2x1xf32> to vector<2x1xf32>
    %123 = vector.broadcast %122 : vector<2x1xf32> to vector<2x128xf32>
    %124 = arith.select %121, %123, %86 : vector<2x128xi1>, vector<2x128xf32>
    %c0_45 = arith.constant 0 : index
    %c0_46 = arith.constant 0 : index
    %125 = vector.load %arg8[%c0_45, %c0_46] : memref<2x128xf32, #tpu.memory_space<vmem>>, vector<2x128xf32>
    tpu.vector_store %arg8[%c0_45, %c0_46], %124 {strides = array<i32>} : memref<2x128xf32, #tpu.memory_space<vmem>>, vector<2x128xf32>,
    return
  }
  func.func @transform_0(%arg0: i32) -> (i32, i32) {
    %c0_i32 = arith.constant 0 : i32
    %c0_i32_0 = arith.constant 0 : i32
    return %arg0, %c0_i32 : i32, i32
  }
  func.func @transform_1(%arg0: i32) -> (i32, i32) {
    %c0_i32 = arith.constant 0 : i32
    %c0_i32_0 = arith.constant 0 : i32
    return %arg0, %c0_i32 : i32, i32
  }
  func.func @transform_2(%arg0: i32) -> (i32, i32) {
    %c0_i32 = arith.constant 0 : i32
    %c0_i32_0 = arith.constant 0 : i32
    %c0_i32_1 = arith.constant 0 : i32
    return %c0_i32, %c0_i32_0 : i32, i32
  }
  func.func @transform_3(%arg0: i32) -> (i32, i32) {
    %c0_i32 = arith.constant 0 : i32
    %c0_i32_0 = arith.constant 0 : i32
    %c0_i32_1 = arith.constant 0 : i32
    return %c0_i32, %c0_i32_0 : i32, i32
  }
  func.func @transform_4(%arg0: i32) -> (i32, i32) {
    %c0_i32 = arith.constant 0 : i32
    %c0_i32_0 = arith.constant 0 : i32
    %c0_i32_1 = arith.constant 0 : i32
    return %c0_i32, %c0_i32_0 : i32, i32
  }
  func.func @transform_5(%arg0: i32) -> (i32, i32) {
    %c0_i32 = arith.constant 0 : i32
    %c0_i32_0 = arith.constant 0 : i32
    %c0_i32_1 = arith.constant 0 : i32
    return %c0_i32, %c0_i32_0 : i32, i32
  }
  func.func @transform_6(%arg0: i32) -> (i32, i32) {
    %c0_i32 = arith.constant 0 : i32
    %c0_i32_0 = arith.constant 0 : i32
    %c0_i32_1 = arith.constant 0 : i32
    return %c0_i32, %c0_i32_0 : i32, i32
  }
  func.func @transform_7(%arg0: i32) -> (i32, i32) {
    %c0_i32 = arith.constant 0 : i32
    %c0_i32_0 = arith.constant 0 : i32
    return %arg0, %c0_i32 : i32, i32
  }
}

</mosaic_0001>

<llo_original>
// kernel: tpu_custom_call.1
$region0: #{tpu_custom_call.1}
  #allocation0 [shape = 'u32[]', space=smem, size = 0x4, offset = 0x4, fixed_abs, tag = 'smem constant byte address 0x4 - core index']
  #allocation1 [shape = 'u32[144,128]{1,0:T(1,128)}', space=vmem, size = 0x12000, scoped, tag = 'internal scratch']
  %s0 = inlined_call_operand.vmem [shape: f32[16,32], index: 0, kind: input, shape index: {}]
  %s1 = inlined_call_operand.vmem [shape: s32[2,1], index: 1, kind: input, shape index: {}]
  %s2 = inlined_call_operand.hbm [shape: f32[32,128], index: 2, kind: input, shape index: {}]
  %s3 = inlined_call_operand.vmem [shape: f32[128,128], index: 3, kind: input, shape index: {}]
  %s4 = inlined_call_operand.vmem [shape: f32[2,128], index: 4, kind: input, shape index: {}]
  %s5 = inlined_call_operand.hbm [shape: f32[5,128], index: 5, kind: input, shape index: {}]
  %s6 = inlined_call_operand.vmem [shape: f32[128,5], index: 6, kind: input, shape index: {}]
  %s7 = inlined_call_operand.hbm [shape: f32[2,128], index: 7, kind: output, shape index: {}]
  %s8 = sld [smem:[#allocation0]]
  $region46: #{tpu_custom_call.1} parent=0
    _
  %s10 = ssub.s32 1, %s8
  %s11 = scalar_select 0, %s10, %s8
  $region1: #{tpu_custom_call.1} parent=0
    #allocation2 [shape = 'u8[16384]{0}', space=vmem, size = 0x4000, scoped, tag = 'input window, operand 2, single buffered']
    #allocation3 [shape = 's32[1]{0}', space=sflag, size = 0x4, scoped, tag = 'scoped memory for tpu_custom_call.1']
    #allocation4 [shape = 's32[1]{0}', space=sflag, size = 0x4, scoped, tag = 'scoped memory for tpu_custom_call.1']
    #allocation5 [shape = 'u8[4096]{0}', space=vmem, size = 0x1000, scoped, tag = 'input window, operand 5, single buffered']
    #allocation6 [shape = 's32[1]{0}', space=sflag, size = 0x4, scoped, tag = 'scoped memory for tpu_custom_call.1']
    #allocation7 [shape = 'u8[1024]{0}', space=vmem, size = 0x400, scoped, tag = 'output window, operand 0, single buffered']
    %12 = vsyncpa [#allocation3], 0
    %13 = vsyncpa [#allocation6], 0
    %14 = vsyncpa [#allocation4], 0
    // Predicated region
    $region2: #{tpu_custom_call.1} parent=1 // pred_check
      _
    $region3: #{tpu_custom_call.1} parent=1 // pred_check_branch
      %16 = sbr.rel (0) target = $region5
    $region4: #{tpu_custom_call.1} parent=1 // pred_region
      _
    $region5: #{tpu_custom_call.1} parent=1 // pred_fallthru
      _
    // Predicated region
    $region6: #{tpu_custom_call.1} parent=1 // pred_check
      _
    $region7: #{tpu_custom_call.1} parent=1 // pred_check_branch
      %18 = sbr.rel (0) target = $region9
    $region8: #{tpu_custom_call.1} parent=1 // pred_region
      _
    $region9: #{tpu_custom_call.1} parent=1 // pred_fallthru
      _
    // Predicated region
    $region10: #{tpu_custom_call.1} parent=1 // pred_check
      _
    $region11: #{tpu_custom_call.1} parent=1 // pred_check_branch
      %20 = sbr.rel (0) target = $region13
    $region12: #{tpu_custom_call.1} parent=1 // pred_region
      %s22 = ssub.s32 512, 512
      %23 = vsyncadd [#allocation3], %s22
      %s24 = sshll.u32 [#allocation2], 4
      %s25 = int_to_ptr.vmem [resolvable:$true] %s24
      %30 = dma.hbm_to_vmem [thread:$0]  %s2, 512, %s25, [#allocation3], 128, 128, 8
    $region13: #{tpu_custom_call.1} parent=1 // pred_fallthru
      _
    // Predicated region
    $region14: #{tpu_custom_call.1} parent=1 // pred_check
      _
    $region15: #{tpu_custom_call.1} parent=1 // pred_check_branch
      %32 = sbr.rel (0) target = $region17
    $region16: #{tpu_custom_call.1} parent=1 // pred_region
      _
    $region17: #{tpu_custom_call.1} parent=1 // pred_fallthru
      _
    // Predicated region
    $region18: #{tpu_custom_call.1} parent=1 // pred_check
      _
    $region19: #{tpu_custom_call.1} parent=1 // pred_check_branch
      %34 = sbr.rel (0) target = $region21
    $region20: #{tpu_custom_call.1} parent=1 // pred_region
      _
    $region21: #{tpu_custom_call.1} parent=1 // pred_fallthru
      _
    // Predicated region
    $region22: #{tpu_custom_call.1} parent=1 // pred_check
      _
    $region23: #{tpu_custom_call.1} parent=1 // pred_check_branch
      %36 = sbr.rel (0) target = $region25
    $region24: #{tpu_custom_call.1} parent=1 // pred_region
      %s38 = ssub.s32 128, 128
      %39 = vsyncadd [#allocation6], %s38
      %s41 = sshll.u32 [#allocation5], 4
      %s42 = int_to_ptr.vmem [resolvable:$true] %s41
      %44 = dma.hbm_to_vmem [thread:$0]  %s5, 128, %s42, [#allocation6]
    $region25: #{tpu_custom_call.1} parent=1 // pred_fallthru
      _
    // Predicated region
    $region26: #{tpu_custom_call.1} parent=1 // pred_check
      _
    $region27: #{tpu_custom_call.1} parent=1 // pred_check_branch
      %46 = sbr.rel (0) target = $region29
    $region28: #{tpu_custom_call.1} parent=1 // pred_region
      _
    $region29: #{tpu_custom_call.1} parent=1 // pred_fallthru
      _
    // Predicated region
    $region30: #{tpu_custom_call.1} parent=1 // pred_check
      _
    $region31: #{tpu_custom_call.1} parent=1 // pred_check_branch
      %48 = sbr.rel (0) target = $region33
    $region32: #{tpu_custom_call.1} parent=1 // pred_region
      %49 = dma.done [#allocation3], 512
    $region33: #{tpu_custom_call.1} parent=1 // pred_fallthru
      _
    // Predicated region
    $region34: #{tpu_custom_call.1} parent=1 // pred_check
      _
    $region35: #{tpu_custom_call.1} parent=1 // pred_check_branch
      %51 = sbr.rel (0) target = $region37
    $region36: #{tpu_custom_call.1} parent=1 // pred_region
      %52 = dma.done [#allocation6], 128
    $region37: #{tpu_custom_call.1} parent=1 // pred_fallthru
      _
    %v53 = vld [vmem:[#allocation5] sm:$0x1f]
    %v54 = vld [vmem:[%s6] sm:$0xff]
    %v55 = vld [vmem:[%s6 + $0x8] sm:$0xff]
    %v56 = vld [vmem:[%s6 + $0x10] sm:$0xff]
    %v57 = vld [vmem:[%s6 + $0x18] sm:$0xff]
    %v58 = vld [vmem:[%s6 + $0x20] sm:$0xff]
    %v59 = vld [vmem:[%s6 + $0x28] sm:$0xff]
    %v60 = vld [vmem:[%s6 + $0x30] sm:$0xff]
    %v61 = vld [vmem:[%s6 + $0x38] sm:$0xff]
    %v62 = vld [vmem:[%s6 + $0x40] sm:$0xff]
    %v63 = vld [vmem:[%s6 + $0x48] sm:$0xff]
    %v64 = vld [vmem:[%s6 + $0x50] sm:$0xff]
    %v65 = vld [vmem:[%s6 + $0x58] sm:$0xff]
    %v66 = vld [vmem:[%s6 + $0x60] sm:$0xff]
    %v67 = vld [vmem:[%s6 + $0x68] sm:$0xff]
    %v68 = vld [vmem:[%s6 + $0x70] sm:$0xff]
    %v69 = vld [vmem:[%s6 + $0x78] sm:$0xff]
    %v70 = vld [vmem:[%s0] sm:$0xff]
    %v71 = vld [vmem:[%s0 + $0x8] sm:$0xff]
    %v72 = vld [vmem:[#allocation2] sm:$0xff]
    %v73 = vld [vmem:[#allocation2 + $0x8] sm:$0xff]
    %v74 = vld [vmem:[#allocation2 + $0x10] sm:$0xff]
    %v75 = vld [vmem:[#allocation2 + $0x18] sm:$0xff]
    %vm76 = vcmask 261120
    %v78 = vsel %vm76, %v70, 0
    %v81 = vsel %vm76, %v71, 0
    %83 = vmatprep.subr.mxu0 0.0
    %84 = vmatpush1.msra.mxu0 %v72
    %85 = vmatprep.subr.mxu0 0.0
    %86 = vmatpush1.msra.mxu0 %v73
    %87 = vmatprep.subr.mxu0 0.0
    %88 = vmatpush1.msra.mxu0 %v74
    %89 = vmatprep.subr.mxu0 0.0
    %90 = vmatpush1.msra.mxu0 %v75
    %91 = vmatprep.subr.mxu0 0.0
    %92 = vmatpush1.msra.mxu0 0.0
    %93 = vmatprep.subr.mxu0 0.0
    %94 = vmatpush1.msra.mxu0 0.0
    %95 = vmatprep.subr.mxu0 0.0
    %96 = vmatpush1.msra.mxu0 0.0
    %97 = vmatprep.subr.mxu0 0.0
    %98 = vmatpush1.msra.mxu0 0.0
    %99 = vmatprep.subr.mxu0 0.0
    %100 = vmatpush1.msra.mxu0 0.0
    %101 = vmatprep.subr.mxu0 0.0
    %102 = vmatpush1.msra.mxu0 0.0
    %103 = vmatprep.subr.mxu0 0.0
    %104 = vmatpush1.msra.mxu0 0.0
    %105 = vmatprep.subr.mxu0 0.0
    %106 = vmatpush1.msra.mxu0 0.0
    %107 = vmatprep.subr.mxu0 0.0
    %108 = vmatpush1.msra.mxu0 0.0
    %109 = vmatprep.subr.mxu0 0.0
    %110 = vmatpush1.msra.mxu0 0.0
    %111 = vmatprep.subr.mxu0 0.0
    %112 = vmatpush1.msra.mxu0 0.0
    %113 = vmatprep.subr.mxu0 0.0
    %114 = vmatpush1.msra.mxu0 0.0
    %115 = vmatprep.subr.mxu0 0.0
    %116 = vmatpush1.msra.mxu0 0.0
    %117 = vmatprep.subr.mxu0 0.0
    %118 = vmatpush1.msra.mxu0 0.0
    %119 = vmatprep.subr.mxu0 0.0
    %120 = vmatpush1.msra.mxu0 0.0
    %121 = vmatprep.subr.mxu0 0.0
    %122 = vmatpush1.msra.mxu0 0.0
    %123 = vmatprep.subr.mxu0 0.0
    %124 = vmatpush1.msra.mxu0 0.0
    %125 = vmatprep.subr.mxu0 0.0
    %126 = vmatpush1.msra.mxu0 0.0
    %127 = vmatprep.subr.mxu0 0.0
    %128 = vmatpush1.msra.mxu0 0.0
    %129 = vmatprep.subr.mxu0 0.0
    %130 = vmatpush1.msra.mxu0 0.0
    %131 = vmatprep.subr.mxu0 0.0
    %132 = vmatpush1.msra.mxu0 0.0
    %133 = vmatprep.subr.mxu0 0.0
    %134 = vmatpush1.msra.mxu0 0.0
    %135 = vmatprep.subr.mxu0 0.0
    %136 = vmatpush1.msra.mxu0 0.0
    %137 = vmatprep.subr.mxu0 0.0
    %138 = vmatpush1.msra.mxu0 0.0
    %139 = vmatprep.subr.mxu0 0.0
    %140 = vmatpush1.msra.mxu0 0.0
    %141 = vmatprep.subr.mxu0 0.0
    %142 = vmatpush1.msra.mxu0 0.0
    %143 = vmatprep.subr.mxu0 0.0
    %144 = vmatpush1.msra.mxu0 0.0
    %145 = vmatprep.subr.mxu0 0.0
    %146 = vmatpush1.msra.mxu0 0.0
    %147 = vmatprep.mubr.f32.mxu0 0.0
    %148 = vmatmul.mubr.f32.gmra.mrb[0].mxu0 %v78
    %v149 = vpop.f32.mrb[0].mxu0
    %v150 = vadd.f32 0.0, %v149
    %v151 = vpop.f32.mrb[0].mxu0
    %152 = vmatprep.mubr.f32.mxu0 0.0
    %153 = vmatmul.mubr.f32.gmra.mrb[0].mxu0 %v81
    %v154 = vpop.f32.mrb[0].mxu0
    %v155 = vadd.f32 0.0, %v154
    %v156 = vpop.f32.mrb[0].mxu0
    %157 = vdwg.mxu0
    %vm158 = vcmask 39936
    %v159 = vsel %vm158, 1.0, 0.0
    %160 = vadd.xlane.f32.xlu0 %v159
    %v161 = vpop.xlane.xlu0 %160
    %v162 = vrcp.pop %v161
    %v164 = vsel %vm158, %v162, 0
    %vm166 = vcmask 1044480
    %v168 = vsel %vm166, %v53, 0
    %170 = vmatprep.subr.mxu0 0.0
    %171 = vmatpush1.msra.mxu0 %v168
    %172 = vmatprep.subr.mxu0 0.0
    %173 = vmatpush1.msra.mxu0 0.0
    %174 = vmatprep.subr.mxu0 0.0
    %175 = vmatpush1.msra.mxu0 0.0
    %176 = vmatprep.subr.mxu0 0.0
    %177 = vmatpush1.msra.mxu0 0.0
    %178 = vmatprep.subr.mxu0 0.0
    %179 = vmatpush1.msra.mxu0 0.0
    %180 = vmatprep.subr.mxu0 0.0
    %181 = vmatpush1.msra.mxu0 0.0
    %182 = vmatprep.subr.mxu0 0.0
    %183 = vmatpush1.msra.mxu0 0.0
    %184 = vmatprep.subr.mxu0 0.0
    %185 = vmatpush1.msra.mxu0 0.0
    %186 = vmatprep.subr.mxu0 0.0
    %187 = vmatpush1.msra.mxu0 0.0
    %188 = vmatprep.subr.mxu0 0.0
    %189 = vmatpush1.msra.mxu0 0.0
    %190 = vmatprep.subr.mxu0 0.0
    %191 = vmatpush1.msra.mxu0 0.0
    %192 = vmatprep.subr.mxu0 0.0
    %193 = vmatpush1.msra.mxu0 0.0
    %194 = vmatprep.subr.mxu0 0.0
    %195 = vmatpush1.msra.mxu0 0.0
    %196 = vmatprep.subr.mxu0 0.0
    %197 = vmatpush1.msra.mxu0 0.0
    %198 = vmatprep.subr.mxu0 0.0
    %199 = vmatpush1.msra.mxu0 0.0
    %200 = vmatprep.subr.mxu0 0.0
    %201 = vmatpush1.msra.mxu0 0.0
    %202 = vmatprep.subr.mxu0 0.0
    %203 = vmatpush1.msra.mxu0 0.0
    %204 = vmatprep.subr.mxu0 0.0
    %205 = vmatpush1.msra.mxu0 0.0
    %206 = vmatprep.subr.mxu0 0.0
    %207 = vmatpush1.msra.mxu0 0.0
    %208 = vmatprep.subr.mxu0 0.0
    %209 = vmatpush1.msra.mxu0 0.0
    %210 = vmatprep.subr.mxu0 0.0
    %211 = vmatpush1.msra.mxu0 0.0
    %212 = vmatprep.subr.mxu0 0.0
    %213 = vmatpush1.msra.mxu0 0.0
    %214 = vmatprep.subr.mxu0 0.0
    %215 = vmatpush1.msra.mxu0 0.0
    %216 = vmatprep.subr.mxu0 0.0
    %217 = vmatpush1.msra.mxu0 0.0
    %218 = vmatprep.subr.mxu0 0.0
    %219 = vmatpush1.msra.mxu0 0.0
    %220 = vmatprep.subr.mxu0 0.0
    %221 = vmatpush1.msra.mxu0 0.0
    %222 = vmatprep.subr.mxu0 0.0
    %223 = vmatpush1.msra.mxu0 0.0
    %224 = vmatprep.subr.mxu0 0.0
    %225 = vmatpush1.msra.mxu0 0.0
    %226 = vmatprep.subr.mxu0 0.0
    %227 = vmatpush1.msra.mxu0 0.0
    %228 = vmatprep.subr.mxu0 0.0
    %229 = vmatpush1.msra.mxu0 0.0
    %230 = vmatprep.subr.mxu0 0.0
    %231 = vmatpush1.msra.mxu0 0.0
    %232 = vmatprep.subr.mxu0 0.0
    %233 = vmatpush1.msra.mxu0 0.0
    %234 = vmatprep.mubr.f32.mxu0 0.0
    %235 = vmatmul.mubr.f32.gmra.mrb[0].mxu0 %v164
    %v236 = vpop.f32.mrb[0].mxu0
    %v237 = vadd.f32 0.0, %v236
    %v238 = vpop.f32.mrb[0].mxu0
    %239 = vmatprep.mubr.f32.mxu0 0.0
    %240 = vmatmul.mubr.f32.gmra.mrb[0].mxu0 %v164
    %v241 = vpop.f32.mrb[0].mxu0
    %v242 = vadd.f32 0.0, %v241
    %v243 = vpop.f32.mrb[0].mxu0
    %244 = vdwg.mxu0
    %v245 = vmul.f32 %v237, %v150
    %v246 = vmul.f32 %v242, %v155
    %v247 = vrot.slane %v245, 4
    %v248 = vadd.f32 %v245, %v247
    %v249 = vrot.slane %v248, 2
    %v250 = vadd.f32 %v248, %v249
    %v251 = vrot.slane %v250, 1
    %v252 = vadd.f32 %v250, %v251
    %v253 = vrot.slane %v246, 4
    %v254 = vadd.f32 %v246, %v253
    %v255 = vrot.slane %v254, 2
    %v256 = vadd.f32 %v254, %v255
    %v257 = vrot.slane %v256, 1
    %v258 = vadd.f32 %v256, %v257
    %v259 = vmul.f32 %v252, %v252
    %v260 = vmul.f32 %v258, %v258
    %vm263 = vcmask 1041409
    %v264 = vsel %vm263, %v260, %v259
    %266 = vmatprep.subr.mxu0 0.0
    %267 = vmatpush1.msra.mxu0 %v54
    %268 = vmatprep.subr.mxu0 0.0
    %269 = vmatpush1.msra.mxu0 %v55
    %270 = vmatprep.subr.mxu0 0.0
    %271 = vmatpush1.msra.mxu0 %v56
    %272 = vmatprep.subr.mxu0 0.0
    %273 = vmatpush1.msra.mxu0 %v57
    %274 = vmatprep.subr.mxu0 0.0
    %275 = vmatpush1.msra.mxu0 %v58
    %276 = vmatprep.subr.mxu0 0.0
    %277 = vmatpush1.msra.mxu0 %v59
    %278 = vmatprep.subr.mxu0 0.0
    %279 = vmatpush1.msra.mxu0 %v60
    %280 = vmatprep.subr.mxu0 0.0
    %281 = vmatpush1.msra.mxu0 %v61
    %282 = vmatprep.subr.mxu0 0.0
    %283 = vmatpush1.msra.mxu0 %v62
    %284 = vmatprep.subr.mxu0 0.0
    %285 = vmatpush1.msra.mxu0 %v63
    %286 = vmatprep.subr.mxu0 0.0
    %287 = vmatpush1.msra.mxu0 %v64
    %288 = vmatprep.subr.mxu0 0.0
    %289 = vmatpush1.msra.mxu0 %v65
    %290 = vmatprep.subr.mxu0 0.0
    %291 = vmatpush1.msra.mxu0 %v66
    %292 = vmatprep.subr.mxu0 0.0
    %293 = vmatpush1.msra.mxu0 %v67
    %294 = vmatprep.subr.mxu0 0.0
    %295 = vmatpush1.msra.mxu0 %v68
    %296 = vmatprep.subr.mxu0 0.0
    %297 = vmatpush1.msra.mxu0 %v69
    %298 = vmatprep.subr.mxu0 0.0
    %299 = vmatpush1.msra.mxu0 0.0
    %300 = vmatprep.subr.mxu0 0.0
    %301 = vmatpush1.msra.mxu0 0.0
    %302 = vmatprep.subr.mxu0 0.0
    %303 = vmatpush1.msra.mxu0 0.0
    %304 = vmatprep.subr.mxu0 0.0
    %305 = vmatpush1.msra.mxu0 0.0
    %306 = vmatprep.subr.mxu0 0.0
    %307 = vmatpush1.msra.mxu0 0.0
    %308 = vmatprep.subr.mxu0 0.0
    %309 = vmatpush1.msra.mxu0 0.0
    %310 = vmatprep.subr.mxu0 0.0
    %311 = vmatpush1.msra.mxu0 0.0
    %312 = vmatprep.subr.mxu0 0.0
    %313 = vmatpush1.msra.mxu0 0.0
    %314 = vmatprep.subr.mxu0 0.0
    %315 = vmatpush1.msra.mxu0 0.0
    %316 = vmatprep.subr.mxu0 0.0
    %317 = vmatpush1.msra.mxu0 0.0
    %318 = vmatprep.subr.mxu0 0.0
    %319 = vmatpush1.msra.mxu0 0.0
    %320 = vmatprep.subr.mxu0 0.0
    %321 = vmatpush1.msra.mxu0 0.0
    %322 = vmatprep.subr.mxu0 0.0
    %323 = vmatpush1.msra.mxu0 0.0
    %324 = vmatprep.subr.mxu0 0.0
    %325 = vmatpush1.msra.mxu0 0.0
    %326 = vmatprep.subr.mxu0 0.0
    %327 = vmatpush1.msra.mxu0 0.0
    %328 = vmatprep.subr.mxu0 0.0
    %329 = vmatpush1.msra.mxu0 0.0
    %330 = vmatprep.mubr.f32.mxu0 0.0
    %331 = vmatmul.mubr.f32.gmra.mrb[0].mxu0 %v264
    %v332 = vpop.f32.mrb[0].mxu0
    %v333 = vadd.f32 1e-07, %v332
    %v334 = vpop.f32.mrb[0].mxu0
    %335 = vdwg.mxu0
    %v336 = vrsqrt.pop %v333
    %v338 = vsel %vm158, %v336, 0
    %340 = vmatprep.subr.mxu0 0.0
    %341 = vmatpush1.msra.mxu0 %v168
    %342 = vmatprep.subr.mxu0 0.0
    %343 = vmatpush1.msra.mxu0 0.0
    %344 = vmatprep.subr.mxu0 0.0
    %345 = vmatpush1.msra.mxu0 0.0
    %346 = vmatprep.subr.mxu0 0.0
    %347 = vmatpush1.msra.mxu0 0.0
    %348 = vmatprep.subr.mxu0 0.0
    %349 = vmatpush1.msra.mxu0 0.0
    %350 = vmatprep.subr.mxu0 0.0
    %351 = vmatpush1.msra.mxu0 0.0
    %352 = vmatprep.subr.mxu0 0.0
    %353 = vmatpush1.msra.mxu0 0.0
    %354 = vmatprep.subr.mxu0 0.0
    %355 = vmatpush1.msra.mxu0 0.0
    %356 = vmatprep.subr.mxu0 0.0
    %357 = vmatpush1.msra.mxu0 0.0
    %358 = vmatprep.subr.mxu0 0.0
    %359 = vmatpush1.msra.mxu0 0.0
    %360 = vmatprep.subr.mxu0 0.0
    %361 = vmatpush1.msra.mxu0 0.0
    %362 = vmatprep.subr.mxu0 0.0
    %363 = vmatpush1.msra.mxu0 0.0
    %364 = vmatprep.subr.mxu0 0.0
    %365 = vmatpush1.msra.mxu0 0.0
    %366 = vmatprep.subr.mxu0 0.0
    %367 = vmatpush1.msra.mxu0 0.0
    %368 = vmatprep.subr.mxu0 0.0
    %369 = vmatpush1.msra.mxu0 0.0
    %370 = vmatprep.subr.mxu0 0.0
    %371 = vmatpush1.msra.mxu0 0.0
    %372 = vmatprep.subr.mxu0 0.0
    %373 = vmatpush1.msra.mxu0 0.0
    %374 = vmatprep.subr.mxu0 0.0
    %375 = vmatpush1.msra.mxu0 0.0
    %376 = vmatprep.subr.mxu0 0.0
    %377 = vmatpush1.msra.mxu0 0.0
    %378 = vmatprep.subr.mxu0 0.0
    %379 = vmatpush1.msra.mxu0 0.0
    %380 = vmatprep.subr.mxu0 0.0
    %381 = vmatpush1.msra.mxu0 0.0
    %382 = vmatprep.subr.mxu0 0.0
    %383 = vmatpush1.msra.mxu0 0.0
    %384 = vmatprep.subr.mxu0 0.0
    %385 = vmatpush1.msra.mxu0 0.0
    %386 = vmatprep.subr.mxu0 0.0
    %387 = vmatpush1.msra.mxu0 0.0
    %388 = vmatprep.subr.mxu0 0.0
    %389 = vmatpush1.msra.mxu0 0.0
    %390 = vmatprep.subr.mxu0 0.0
    %391 = vmatpush1.msra.mxu0 0.0
    %392 = vmatprep.subr.mxu0 0.0
    %393 = vmatpush1.msra.mxu0 0.0
    %394 = vmatprep.subr.mxu0 0.0
    %395 = vmatpush1.msra.mxu0 0.0
    %396 = vmatprep.subr.mxu0 0.0
    %397 = vmatpush1.msra.mxu0 0.0
    %398 = vmatprep.subr.mxu0 0.0
    %399 = vmatpush1.msra.mxu0 0.0
    %400 = vmatprep.subr.mxu0 0.0
    %401 = vmatpush1.msra.mxu0 0.0
    %402 = vmatprep.subr.mxu0 0.0
    %403 = vmatpush1.msra.mxu0 0.0
    %404 = vmatprep.mubr.f32.mxu0 0.0
    %405 = vmatmul.mubr.f32.gmra.mrb[0].mxu0 %v338
    %v406 = vpop.f32.mrb[0].mxu0
    %v407 = vadd.f32 0.0, %v406
    %v408 = vpop.f32.mrb[0].mxu0
    %409 = vdwg.mxu0
    %v411 = vrot.slane %v407, 1
    %v414 = vmul.f32 %v252, %v407
    %v415 = vmul.f32 %v258, %v411
    %v416 = vlaneseq
    %v417 = vshrl.u32 %v416, 7
    %v418 = vsub.s32 0, %v417
    %v419 = vrot.slane %v414, %v418
    %v420 = vlaneseq
    %v421 = vshrl.u32 %v420, 7
    %v422 = vsub.s32 0, %v421
    %v423 = vrot.slane %v415, %v422
    %v424 = vmul.f32 %v150, %v419
    %v425 = vmul.f32 %v155, %v423
    %426 = vmatprep.subr.mxu0 0.0
    %427 = vmatpush1.msra.mxu0 %v54
    %428 = vmatprep.subr.mxu0 0.0
    %429 = vmatpush1.msra.mxu0 %v55
    %430 = vmatprep.subr.mxu0 0.0
    %431 = vmatpush1.msra.mxu0 %v56
    %432 = vmatprep.subr.mxu0 0.0
    %433 = vmatpush1.msra.mxu0 %v57
    %434 = vmatprep.subr.mxu0 0.0
    %435 = vmatpush1.msra.mxu0 %v58
    %436 = vmatprep.subr.mxu0 0.0
    %437 = vmatpush1.msra.mxu0 %v59
    %438 = vmatprep.subr.mxu0 0.0
    %439 = vmatpush1.msra.mxu0 %v60
    %440 = vmatprep.subr.mxu0 0.0
    %441 = vmatpush1.msra.mxu0 %v61
    %442 = vmatprep.subr.mxu0 0.0
    %443 = vmatpush1.msra.mxu0 %v62
    %444 = vmatprep.subr.mxu0 0.0
    %445 = vmatpush1.msra.mxu0 %v63
    %446 = vmatprep.subr.mxu0 0.0
    %447 = vmatpush1.msra.mxu0 %v64
    %448 = vmatprep.subr.mxu0 0.0
    %449 = vmatpush1.msra.mxu0 %v65
    %450 = vmatprep.subr.mxu0 0.0
    %451 = vmatpush1.msra.mxu0 %v66
    %452 = vmatprep.subr.mxu0 0.0
    %453 = vmatpush1.msra.mxu0 %v67
    %454 = vmatprep.subr.mxu0 0.0
    %455 = vmatpush1.msra.mxu0 %v68
    %456 = vmatprep.subr.mxu0 0.0
    %457 = vmatpush1.msra.mxu0 %v69
    %458 = vmatprep.subr.mxu0 0.0
    %459 = vmatpush1.msra.mxu0 0.0
    %460 = vmatprep.subr.mxu0 0.0
    %461 = vmatpush1.msra.mxu0 0.0
    %462 = vmatprep.subr.mxu0 0.0
    %463 = vmatpush1.msra.mxu0 0.0
    %464 = vmatprep.subr.mxu0 0.0
    %465 = vmatpush1.msra.mxu0 0.0
    %466 = vmatprep.subr.mxu0 0.0
    %467 = vmatpush1.msra.mxu0 0.0
    %468 = vmatprep.subr.mxu0 0.0
    %469 = vmatpush1.msra.mxu0 0.0
    %470 = vmatprep.subr.mxu0 0.0
    %471 = vmatpush1.msra.mxu0 0.0
    %472 = vmatprep.subr.mxu0 0.0
    %473 = vmatpush1.msra.mxu0 0.0
    %474 = vmatprep.subr.mxu0 0.0
    %475 = vmatpush1.msra.mxu0 0.0
    %476 = vmatprep.subr.mxu0 0.0
    %477 = vmatpush1.msra.mxu0 0.0
    %478 = vmatprep.subr.mxu0 0.0
    %479 = vmatpush1.msra.mxu0 0.0
    %480 = vmatprep.subr.mxu0 0.0
    %481 = vmatpush1.msra.mxu0 0.0
    %482 = vmatprep.subr.mxu0 0.0
    %483 = vmatpush1.msra.mxu0 0.0
    %484 = vmatprep.subr.mxu0 0.0
    %485 = vmatpush1.msra.mxu0 0.0
    %486 = vmatprep.subr.mxu0 0.0
    %487 = vmatpush1.msra.mxu0 0.0
    %488 = vmatprep.subr.mxu0 0.0
    %489 = vmatpush1.msra.mxu0 0.0
    %490 = vmatprep.mubr.f32.mxu0 0.0
    %491 = vmatmul.mubr.f32.gmra.mrb[0].mxu0 %v424
    %v492 = vpop.f32.mrb[0].mxu0
    %v493 = vadd.f32 0.0, %v492
    %v494 = vpop.f32.mrb[0].mxu0
    %495 = vmatprep.mubr.f32.mxu0 0.0
    %496 = vmatmul.mubr.f32.gmra.mrb[0].mxu0 %v425
    %v497 = vpop.f32.mrb[0].mxu0
    %v498 = vadd.f32 0.0, %v497
    %v499 = vpop.f32.mrb[0].mxu0
    %500 = vdwg.mxu0
    %v501 = vsel %vm158, %v493, -inf
    %502 = vmax.xlane.f32.xlu0 %v501
    %v503 = vpop.xlane.xlu0 %502
    %v504 = vsel %vm158, %v498, -inf
    %505 = vmax.xlane.f32.xlu0 %v504
    %v506 = vpop.xlane.xlu0 %505
    %v507 = vsub.f32 %v493, %v503
    %v508 = vsub.f32 %v498, %v506
    %v509 = vmul.f32 %v507, 1.442695
    %v510 = vpow.pop %v509
    %v511 = vmul.f32 %v508, 1.442695
    %v512 = vpow.pop %v511
    %v513 = vsel %vm158, %v510, 0.0
    %514 = vadd.xlane.f32.xlu0 %v513
    %v515 = vpop.xlane.xlu0 %514
    %v516 = vsel %vm158, %v512, 0.0
    %517 = vadd.xlane.f32.xlu0 %v516
    %v518 = vpop.xlane.xlu0 %517
    %v519 = vrcp.pop %v515
    %v520 = vrcp.pop %v518
    %v521 = vmul.f32 %v510, %v519
    %v522 = vmul.f32 %v512, %v520
    %v524 = vsel %vm158, %v521, 0
    %v527 = vsel %vm158, %v522, 0
    %529 = vmatprep.subr.mxu0 0.0
    %530 = vmatpush1.msra.mxu0 %v168
    %531 = vmatprep.subr.mxu0 0.0
    %532 = vmatpush1.msra.mxu0 0.0
    %533 = vmatprep.subr.mxu0 0.0
    %534 = vmatpush1.msra.mxu0 0.0
    %535 = vmatprep.subr.mxu0 0.0
    %536 = vmatpush1.msra.mxu0 0.0
    %537 = vmatprep.subr.mxu0 0.0
    %538 = vmatpush1.msra.mxu0 0.0
    %539 = vmatprep.subr.mxu0 0.0
    %540 = vmatpush1.msra.mxu0 0.0
    %541 = vmatprep.subr.mxu0 0.0
    %542 = vmatpush1.msra.mxu0 0.0
    %543 = vmatprep.subr.mxu0 0.0
    %544 = vmatpush1.msra.mxu0 0.0
    %545 = vmatprep.subr.mxu0 0.0
    %546 = vmatpush1.msra.mxu0 0.0
    %547 = vmatprep.subr.mxu0 0.0
    %548 = vmatpush1.msra.mxu0 0.0
    %549 = vmatprep.subr.mxu0 0.0
    %550 = vmatpush1.msra.mxu0 0.0
    %551 = vmatprep.subr.mxu0 0.0
    %552 = vmatpush1.msra.mxu0 0.0
    %553 = vmatprep.subr.mxu0 0.0
    %554 = vmatpush1.msra.mxu0 0.0
    %555 = vmatprep.subr.mxu0 0.0
    %556 = vmatpush1.msra.mxu0 0.0
    %557 = vmatprep.subr.mxu0 0.0
    %558 = vmatpush1.msra.mxu0 0.0
    %559 = vmatprep.subr.mxu0 0.0
    %560 = vmatpush1.msra.mxu0 0.0
    %561 = vmatprep.subr.mxu0 0.0
    %562 = vmatpush1.msra.mxu0 0.0
    %563 = vmatprep.subr.mxu0 0.0
    %564 = vmatpush1.msra.mxu0 0.0
    %565 = vmatprep.subr.mxu0 0.0
    %566 = vmatpush1.msra.mxu0 0.0
    %567 = vmatprep.subr.mxu0 0.0
    %568 = vmatpush1.msra.mxu0 0.0
    %569 = vmatprep.subr.mxu0 0.0
    %570 = vmatpush1.msra.mxu0 0.0
    %571 = vmatprep.subr.mxu0 0.0
    %572 = vmatpush1.msra.mxu0 0.0
    %573 = vmatprep.subr.mxu0 0.0
    %574 = vmatpush1.msra.mxu0 0.0
    %575 = vmatprep.subr.mxu0 0.0
    %576 = vmatpush1.msra.mxu0 0.0
    %577 = vmatprep.subr.mxu0 0.0
    %578 = vmatpush1.msra.mxu0 0.0
    %579 = vmatprep.subr.mxu0 0.0
    %580 = vmatpush1.msra.mxu0 0.0
    %581 = vmatprep.subr.mxu0 0.0
    %582 = vmatpush1.msra.mxu0 0.0
    %583 = vmatprep.subr.mxu0 0.0
    %584 = vmatpush1.msra.mxu0 0.0
    %585 = vmatprep.subr.mxu0 0.0
    %586 = vmatpush1.msra.mxu0 0.0
    %587 = vmatprep.subr.mxu0 0.0
    %588 = vmatpush1.msra.mxu0 0.0
    %589 = vmatprep.subr.mxu0 0.0
    %590 = vmatpush1.msra.mxu0 0.0
    %591 = vmatprep.subr.mxu0 0.0
    %592 = vmatpush1.msra.mxu0 0.0
    %593 = vmatprep.mubr.f32.mxu0 0.0
    %594 = vmatmul.mubr.f32.gmra.mrb[0].mxu0 %v524
    %v595 = vpop.f32.mrb[0].mxu0
    %v596 = vadd.f32 0.0, %v595
    %v597 = vpop.f32.mrb[0].mxu0
    %598 = vmatprep.mubr.f32.mxu0 0.0
    %599 = vmatmul.mubr.f32.gmra.mrb[0].mxu0 %v527
    %v600 = vpop.f32.mrb[0].mxu0
    %v601 = vadd.f32 0.0, %v600
    %v602 = vpop.f32.mrb[0].mxu0
    %603 = vdwg.mxu0
    %v604 = vmul.f32 %v596, %v150
    %v605 = vmul.f32 %v601, %v155
    %v606 = vrot.slane %v604, 4
    %v607 = vadd.f32 %v604, %v606
    %v608 = vrot.slane %v607, 2
    %v609 = vadd.f32 %v607, %v608
    %v610 = vrot.slane %v609, 1
    %v611 = vadd.f32 %v609, %v610
    %v612 = vrot.slane %v605, 4
    %v613 = vadd.f32 %v605, %v612
    %v614 = vrot.slane %v613, 2
    %v615 = vadd.f32 %v613, %v614
    %v616 = vrot.slane %v615, 1
    %v617 = vadd.f32 %v615, %v616
    %v618 = vmul.f32 %v611, %v611
    %v619 = vmul.f32 %v617, %v617
    %v622 = vsel %vm263, %v619, %v618
    %624 = vmatprep.subr.mxu0 0.0
    %625 = vmatpush1.msra.mxu0 %v54
    %626 = vmatprep.subr.mxu0 0.0
    %627 = vmatpush1.msra.mxu0 %v55
    %628 = vmatprep.subr.mxu0 0.0
    %629 = vmatpush1.msra.mxu0 %v56
    %630 = vmatprep.subr.mxu0 0.0
    %631 = vmatpush1.msra.mxu0 %v57
    %632 = vmatprep.subr.mxu0 0.0
    %633 = vmatpush1.msra.mxu0 %v58
    %634 = vmatprep.subr.mxu0 0.0
    %635 = vmatpush1.msra.mxu0 %v59
    %636 = vmatprep.subr.mxu0 0.0
    %637 = vmatpush1.msra.mxu0 %v60
    %638 = vmatprep.subr.mxu0 0.0
    %639 = vmatpush1.msra.mxu0 %v61
    %640 = vmatprep.subr.mxu0 0.0
    %641 = vmatpush1.msra.mxu0 %v62
    %642 = vmatprep.subr.mxu0 0.0
    %643 = vmatpush1.msra.mxu0 %v63
    %644 = vmatprep.subr.mxu0 0.0
    %645 = vmatpush1.msra.mxu0 %v64
    %646 = vmatprep.subr.mxu0 0.0
    %647 = vmatpush1.msra.mxu0 %v65
    %648 = vmatprep.subr.mxu0 0.0
    %649 = vmatpush1.msra.mxu0 %v66
    %650 = vmatprep.subr.mxu0 0.0
    %651 = vmatpush1.msra.mxu0 %v67
    %652 = vmatprep.subr.mxu0 0.0
    %653 = vmatpush1.msra.mxu0 %v68
    %654 = vmatprep.subr.mxu0 0.0
    %655 = vmatpush1.msra.mxu0 %v69
    %656 = vmatprep.subr.mxu0 0.0
    %657 = vmatpush1.msra.mxu0 0.0
    %658 = vmatprep.subr.mxu0 0.0
    %659 = vmatpush1.msra.mxu0 0.0
    %660 = vmatprep.subr.mxu0 0.0
    %661 = vmatpush1.msra.mxu0 0.0
    %662 = vmatprep.subr.mxu0 0.0
    %663 = vmatpush1.msra.mxu0 0.0
    %664 = vmatprep.subr.mxu0 0.0
    %665 = vmatpush1.msra.mxu0 0.0
    %666 = vmatprep.subr.mxu0 0.0
    %667 = vmatpush1.msra.mxu0 0.0
    %668 = vmatprep.subr.mxu0 0.0
    %669 = vmatpush1.msra.mxu0 0.0
    %670 = vmatprep.subr.mxu0 0.0
    %671 = vmatpush1.msra.mxu0 0.0
    %672 = vmatprep.subr.mxu0 0.0
    %673 = vmatpush1.msra.mxu0 0.0
    %674 = vmatprep.subr.mxu0 0.0
    %675 = vmatpush1.msra.mxu0 0.0
    %676 = vmatprep.subr.mxu0 0.0
    %677 = vmatpush1.msra.mxu0 0.0
    %678 = vmatprep.subr.mxu0 0.0
    %679 = vmatpush1.msra.mxu0 0.0
    %680 = vmatprep.subr.mxu0 0.0
    %681 = vmatpush1.msra.mxu0 0.0
    %682 = vmatprep.subr.mxu0 0.0
    %683 = vmatpush1.msra.mxu0 0.0
    %684 = vmatprep.subr.mxu0 0.0
    %685 = vmatpush1.msra.mxu0 0.0
    %686 = vmatprep.subr.mxu0 0.0
    %687 = vmatpush1.msra.mxu0 0.0
    %688 = vmatprep.mubr.f32.mxu0 0.0
    %689 = vmatmul.mubr.f32.gmra.mrb[0].mxu0 %v622
    %v690 = vpop.f32.mrb[0].mxu0
    %v691 = vadd.f32 1e-07, %v690
    %v692 = vpop.f32.mrb[0].mxu0
    %693 = vdwg.mxu0
    %v694 = vrsqrt.pop %v691
    %v696 = vsel %vm158, %v694, 0
    %698 = vmatprep.subr.mxu0 0.0
    %699 = vmatpush1.msra.mxu0 %v168
    %700 = vmatprep.subr.mxu0 0.0
    %701 = vmatpush1.msra.mxu0 0.0
    %702 = vmatprep.subr.mxu0 0.0
    %703 = vmatpush1.msra.mxu0 0.0
    %704 = vmatprep.subr.mxu0 0.0
    %705 = vmatpush1.msra.mxu0 0.0
    %706 = vmatprep.subr.mxu0 0.0
    %707 = vmatpush1.msra.mxu0 0.0
    %708 = vmatprep.subr.mxu0 0.0
    %709 = vmatpush1.msra.mxu0 0.0
    %710 = vmatprep.subr.mxu0 0.0
    %711 = vmatpush1.msra.mxu0 0.0
    %712 = vmatprep.subr.mxu0 0.0
    %713 = vmatpush1.msra.mxu0 0.0
    %714 = vmatprep.subr.mxu0 0.0
    %715 = vmatpush1.msra.mxu0 0.0
    %716 = vmatprep.subr.mxu0 0.0
    %717 = vmatpush1.msra.mxu0 0.0
    %718 = vmatprep.subr.mxu0 0.0
    %719 = vmatpush1.msra.mxu0 0.0
    %720 = vmatprep.subr.mxu0 0.0
    %721 = vmatpush1.msra.mxu0 0.0
    %722 = vmatprep.subr.mxu0 0.0
    %723 = vmatpush1.msra.mxu0 0.0
    %724 = vmatprep.subr.mxu0 0.0
    %725 = vmatpush1.msra.mxu0 0.0
    %726 = vmatprep.subr.mxu0 0.0
    %727 = vmatpush1.msra.mxu0 0.0
    %728 = vmatprep.subr.mxu0 0.0
    %729 = vmatpush1.msra.mxu0 0.0
    %730 = vmatprep.subr.mxu0 0.0
    %731 = vmatpush1.msra.mxu0 0.0
    %732 = vmatprep.subr.mxu0 0.0
    %733 = vmatpush1.msra.mxu0 0.0
    %734 = vmatprep.subr.mxu0 0.0
    %735 = vmatpush1.msra.mxu0 0.0
    %736 = vmatprep.subr.mxu0 0.0
    %737 = vmatpush1.msra.mxu0 0.0
    %738 = vmatprep.subr.mxu0 0.0
    %739 = vmatpush1.msra.mxu0 0.0
    %740 = vmatprep.subr.mxu0 0.0
    %741 = vmatpush1.msra.mxu0 0.0
    %742 = vmatprep.subr.mxu0 0.0
    %743 = vmatpush1.msra.mxu0 0.0
    %744 = vmatprep.subr.mxu0 0.0
    %745 = vmatpush1.msra.mxu0 0.0
    %746 = vmatprep.subr.mxu0 0.0
    %747 = vmatpush1.msra.mxu0 0.0
    %748 = vmatprep.subr.mxu0 0.0
    %749 = vmatpush1.msra.mxu0 0.0
    %750 = vmatprep.subr.mxu0 0.0
    %751 = vmatpush1.msra.mxu0 0.0
    %752 = vmatprep.subr.mxu0 0.0
    %753 = vmatpush1.msra.mxu0 0.0
    %754 = vmatprep.subr.mxu0 0.0
    %755 = vmatpush1.msra.mxu0 0.0
    %756 = vmatprep.subr.mxu0 0.0
    %757 = vmatpush1.msra.mxu0 0.0
    %758 = vmatprep.subr.mxu0 0.0
    %759 = vmatpush1.msra.mxu0 0.0
    %760 = vmatprep.subr.mxu0 0.0
    %761 = vmatpush1.msra.mxu0 0.0
    %762 = vmatprep.mubr.f32.mxu0 0.0
    %763 = vmatmul.mubr.f32.gmra.mrb[0].mxu0 %v696
    %v764 = vpop.f32.mrb[0].mxu0
    %v765 = vadd.f32 0.0, %v764
    %v766 = vpop.f32.mrb[0].mxu0
    %767 = vdwg.mxu0
    %v769 = vrot.slane %v765, 1
    %v772 = vmul.f32 %v611, %v765
    %v773 = vmul.f32 %v617, %v769
    %v774 = vlaneseq
    %v775 = vshrl.u32 %v774, 7
    %v776 = vsub.s32 0, %v775
    %v777 = vrot.slane %v772, %v776
    %v778 = vlaneseq
    %v779 = vshrl.u32 %v778, 7
    %v780 = vsub.s32 0, %v779
    %v781 = vrot.slane %v773, %v780
    %v782 = vmul.f32 %v150, %v777
    %v783 = vmul.f32 %v155, %v781
    %784 = vmatprep.subr.mxu0 0.0
    %785 = vmatpush1.msra.mxu0 %v54
    %786 = vmatprep.subr.mxu0 0.0
    %787 = vmatpush1.msra.mxu0 %v55
    %788 = vmatprep.subr.mxu0 0.0
    %789 = vmatpush1.msra.mxu0 %v56
    %790 = vmatprep.subr.mxu0 0.0
    %791 = vmatpush1.msra.mxu0 %v57
    %792 = vmatprep.subr.mxu0 0.0
    %793 = vmatpush1.msra.mxu0 %v58
    %794 = vmatprep.subr.mxu0 0.0
    %795 = vmatpush1.msra.mxu0 %v59
    %796 = vmatprep.subr.mxu0 0.0
    %797 = vmatpush1.msra.mxu0 %v60
    %798 = vmatprep.subr.mxu0 0.0
    %799 = vmatpush1.msra.mxu0 %v61
    %800 = vmatprep.subr.mxu0 0.0
    %801 = vmatpush1.msra.mxu0 %v62
    %802 = vmatprep.subr.mxu0 0.0
    %803 = vmatpush1.msra.mxu0 %v63
    %804 = vmatprep.subr.mxu0 0.0
    %805 = vmatpush1.msra.mxu0 %v64
    %806 = vmatprep.subr.mxu0 0.0
    %807 = vmatpush1.msra.mxu0 %v65
    %808 = vmatprep.subr.mxu0 0.0
    %809 = vmatpush1.msra.mxu0 %v66
    %810 = vmatprep.subr.mxu0 0.0
    %811 = vmatpush1.msra.mxu0 %v67
    %812 = vmatprep.subr.mxu0 0.0
    %813 = vmatpush1.msra.mxu0 %v68
    %814 = vmatprep.subr.mxu0 0.0
    %815 = vmatpush1.msra.mxu0 %v69
    %816 = vmatprep.subr.mxu0 0.0
    %817 = vmatpush1.msra.mxu0 0.0
    %818 = vmatprep.subr.mxu0 0.0
    %819 = vmatpush1.msra.mxu0 0.0
    %820 = vmatprep.subr.mxu0 0.0
    %821 = vmatpush1.msra.mxu0 0.0
    %822 = vmatprep.subr.mxu0 0.0
    %823 = vmatpush1.msra.mxu0 0.0
    %824 = vmatprep.subr.mxu0 0.0
    %825 = vmatpush1.msra.mxu0 0.0
    %826 = vmatprep.subr.mxu0 0.0
    %827 = vmatpush1.msra.mxu0 0.0
    %828 = vmatprep.subr.mxu0 0.0
    %829 = vmatpush1.msra.mxu0 0.0
    %830 = vmatprep.subr.mxu0 0.0
    %831 = vmatpush1.msra.mxu0 0.0
    %832 = vmatprep.subr.mxu0 0.0
    %833 = vmatpush1.msra.mxu0 0.0
    %834 = vmatprep.subr.mxu0 0.0
    %835 = vmatpush1.msra.mxu0 0.0
    %836 = vmatprep.subr.mxu0 0.0
    %837 = vmatpush1.msra.mxu0 0.0
    %838 = vmatprep.subr.mxu0 0.0
    %839 = vmatpush1.msra.mxu0 0.0
    %840 = vmatprep.subr.mxu0 0.0
    %841 = vmatpush1.msra.mxu0 0.0
    %842 = vmatprep.subr.mxu0 0.0
    %843 = vmatpush1.msra.mxu0 0.0
    %844 = vmatprep.subr.mxu0 0.0
    %845 = vmatpush1.msra.mxu0 0.0
    %846 = vmatprep.subr.mxu0 0.0
    %847 = vmatpush1.msra.mxu0 0.0
    %848 = vmatprep.mubr.f32.mxu0 0.0
    %849 = vmatmul.mubr.f32.gmra.mrb[0].mxu0 %v782
    %v850 = vpop.f32.mrb[0].mxu0
    %v851 = vadd.f32 0.0, %v850
    %v852 = vpop.f32.mrb[0].mxu0
    %853 = vmatprep.mubr.f32.mxu0 0.0
    %854 = vmatmul.mubr.f32.gmra.mrb[0].mxu0 %v783
    %v855 = vpop.f32.mrb[0].mxu0
    %v856 = vadd.f32 0.0, %v855
    %v857 = vpop.f32.mrb[0].mxu0
    %858 = vdwg.mxu0
    %v859 = vsel %vm158, %v851, -inf
    %860 = vmax.xlane.f32.xlu0 %v859
    %v861 = vpop.xlane.xlu0 %860
    %v862 = vsel %vm158, %v856, -inf
    %863 = vmax.xlane.f32.xlu0 %v862
    %v864 = vpop.xlane.xlu0 %863
    %v865 = vsub.f32 %v851, %v861
    %v866 = vsub.f32 %v856, %v864
    %v867 = vmul.f32 %v865, 1.442695
    %v868 = vpow.pop %v867
    %v869 = vmul.f32 %v866, 1.442695
    %v870 = vpow.pop %v869
    %v871 = vsel %vm158, %v868, 0.0
    %872 = vadd.xlane.f32.xlu0 %v871
    %v873 = vpop.xlane.xlu0 %872
    %v874 = vsel %vm158, %v870, 0.0
    %875 = vadd.xlane.f32.xlu0 %v874
    %v876 = vpop.xlane.xlu0 %875
    %v877 = vrcp.pop %v873
    %v878 = vrcp.pop %v876
    %v879 = vmul.f32 %v868, %v877
    %v880 = vmul.f32 %v870, %v878
    %v882 = vsel %vm158, %v879, 0
    %v885 = vsel %vm158, %v880, 0
    %887 = vmatprep.subr.mxu0 0.0
    %888 = vmatpush1.msra.mxu0 %v168
    %889 = vmatprep.subr.mxu0 0.0
    %890 = vmatpush1.msra.mxu0 0.0
    %891 = vmatprep.subr.mxu0 0.0
    %892 = vmatpush1.msra.mxu0 0.0
    %893 = vmatprep.subr.mxu0 0.0
    %894 = vmatpush1.msra.mxu0 0.0
    %895 = vmatprep.subr.mxu0 0.0
    %896 = vmatpush1.msra.mxu0 0.0
    %897 = vmatprep.subr.mxu0 0.0
    %898 = vmatpush1.msra.mxu0 0.0
    %899 = vmatprep.subr.mxu0 0.0
    %900 = vmatpush1.msra.mxu0 0.0
    %901 = vmatprep.subr.mxu0 0.0
    %902 = vmatpush1.msra.mxu0 0.0
    %903 = vmatprep.subr.mxu0 0.0
    %904 = vmatpush1.msra.mxu0 0.0
    %905 = vmatprep.subr.mxu0 0.0
    %906 = vmatpush1.msra.mxu0 0.0
    %907 = vmatprep.subr.mxu0 0.0
    %908 = vmatpush1.msra.mxu0 0.0
    %909 = vmatprep.subr.mxu0 0.0
    %910 = vmatpush1.msra.mxu0 0.0
    %911 = vmatprep.subr.mxu0 0.0
    %912 = vmatpush1.msra.mxu0 0.0
    %913 = vmatprep.subr.mxu0 0.0
    %914 = vmatpush1.msra.mxu0 0.0
    %915 = vmatprep.subr.mxu0 0.0
    %916 = vmatpush1.msra.mxu0 0.0
    %917 = vmatprep.subr.mxu0 0.0
    %918 = vmatpush1.msra.mxu0 0.0
    %919 = vmatprep.subr.mxu0 0.0
    %920 = vmatpush1.msra.mxu0 0.0
    %921 = vmatprep.subr.mxu0 0.0
    %922 = vmatpush1.msra.mxu0 0.0
    %923 = vmatprep.subr.mxu0 0.0
    %924 = vmatpush1.msra.mxu0 0.0
    %925 = vmatprep.subr.mxu0 0.0
    %926 = vmatpush1.msra.mxu0 0.0
    %927 = vmatprep.subr.mxu0 0.0
    %928 = vmatpush1.msra.mxu0 0.0
    %929 = vmatprep.subr.mxu0 0.0
    %930 = vmatpush1.msra.mxu0 0.0
    %931 = vmatprep.subr.mxu0 0.0
    %932 = vmatpush1.msra.mxu0 0.0
    %933 = vmatprep.subr.mxu0 0.0
    %934 = vmatpush1.msra.mxu0 0.0
    %935 = vmatprep.subr.mxu0 0.0
    %936 = vmatpush1.msra.mxu0 0.0
    %937 = vmatprep.subr.mxu0 0.0
    %938 = vmatpush1.msra.mxu0 0.0
    %939 = vmatprep.subr.mxu0 0.0
    %940 = vmatpush1.msra.mxu0 0.0
    %941 = vmatprep.subr.mxu0 0.0
    %942 = vmatpush1.msra.mxu0 0.0
    %943 = vmatprep.subr.mxu0 0.0
    %944 = vmatpush1.msra.mxu0 0.0
    %945 = vmatprep.subr.mxu0 0.0
    %946 = vmatpush1.msra.mxu0 0.0
    %947 = vmatprep.subr.mxu0 0.0
    %948 = vmatpush1.msra.mxu0 0.0
    %949 = vmatprep.subr.mxu0 0.0
    %950 = vmatpush1.msra.mxu0 0.0
    %951 = vmatprep.mubr.f32.mxu0 0.0
    %952 = vmatmul.mubr.f32.gmra.mrb[0].mxu0 %v882
    %v953 = vpop.f32.mrb[0].mxu0
    %v954 = vadd.f32 0.0, %v953
    %v955 = vpop.f32.mrb[0].mxu0
    %956 = vmatprep.mubr.f32.mxu0 0.0
    %957 = vmatmul.mubr.f32.gmra.mrb[0].mxu0 %v885
    %v958 = vpop.f32.mrb[0].mxu0
    %v959 = vadd.f32 0.0, %v958
    %v960 = vpop.f32.mrb[0].mxu0
    %961 = vdwg.mxu0
    %v962 = vmul.f32 %v954, %v150
    %v963 = vmul.f32 %v959, %v155
    %v964 = vrot.slane %v962, 4
    %v965 = vadd.f32 %v962, %v964
    %v966 = vrot.slane %v965, 2
    %v967 = vadd.f32 %v965, %v966
    %v968 = vrot.slane %v967, 1
    %v969 = vadd.f32 %v967, %v968
    %v970 = vrot.slane %v963, 4
    %v971 = vadd.f32 %v963, %v970
    %v972 = vrot.slane %v971, 2
    %v973 = vadd.f32 %v971, %v972
    %v974 = vrot.slane %v973, 1
    %v975 = vadd.f32 %v973, %v974
    %v976 = vmul.f32 %v969, %v969
    %v977 = vmul.f32 %v975, %v975
    %v980 = vsel %vm263, %v977, %v976
    %982 = vmatprep.subr.mxu0 0.0
    %983 = vmatpush1.msra.mxu0 %v54
    %984 = vmatprep.subr.mxu0 0.0
    %985 = vmatpush1.msra.mxu0 %v55
    %986 = vmatprep.subr.mxu0 0.0
    %987 = vmatpush1.msra.mxu0 %v56
    %988 = vmatprep.subr.mxu0 0.0
    %989 = vmatpush1.msra.mxu0 %v57
    %990 = vmatprep.subr.mxu0 0.0
    %991 = vmatpush1.msra.mxu0 %v58
    %992 = vmatprep.subr.mxu0 0.0
    %993 = vmatpush1.msra.mxu0 %v59
    %994 = vmatprep.subr.mxu0 0.0
    %995 = vmatpush1.msra.mxu0 %v60
    %996 = vmatprep.subr.mxu0 0.0
    %997 = vmatpush1.msra.mxu0 %v61
    %998 = vmatprep.subr.mxu0 0.0
    %999 = vmatpush1.msra.mxu0 %v62
    %1000 = vmatprep.subr.mxu0 0.0
    %1001 = vmatpush1.msra.mxu0 %v63
    %1002 = vmatprep.subr.mxu0 0.0
    %1003 = vmatpush1.msra.mxu0 %v64
    %1004 = vmatprep.subr.mxu0 0.0
    %1005 = vmatpush1.msra.mxu0 %v65
    %1006 = vmatprep.subr.mxu0 0.0
    %1007 = vmatpush1.msra.mxu0 %v66
    %1008 = vmatprep.subr.mxu0 0.0
    %1009 = vmatpush1.msra.mxu0 %v67
    %1010 = vmatprep.subr.mxu0 0.0
    %1011 = vmatpush1.msra.mxu0 %v68
    %1012 = vmatprep.subr.mxu0 0.0
    %1013 = vmatpush1.msra.mxu0 %v69
    %1014 = vmatprep.subr.mxu0 0.0
    %1015 = vmatpush1.msra.mxu0 0.0
    %1016 = vmatprep.subr.mxu0 0.0
    %1017 = vmatpush1.msra.mxu0 0.0
    %1018 = vmatprep.subr.mxu0 0.0
    %1019 = vmatpush1.msra.mxu0 0.0
    %1020 = vmatprep.subr.mxu0 0.0
    %1021 = vmatpush1.msra.mxu0 0.0
    %1022 = vmatprep.subr.mxu0 0.0
    %1023 = vmatpush1.msra.mxu0 0.0
    %1024 = vmatprep.subr.mxu0 0.0
    %1025 = vmatpush1.msra.mxu0 0.0
    %1026 = vmatprep.subr.mxu0 0.0
    %1027 = vmatpush1.msra.mxu0 0.0
    %1028 = vmatprep.subr.mxu0 0.0
    %1029 = vmatpush1.msra.mxu0 0.0
    %1030 = vmatprep.subr.mxu0 0.0
    %1031 = vmatpush1.msra.mxu0 0.0
    %1032 = vmatprep.subr.mxu0 0.0
    %1033 = vmatpush1.msra.mxu0 0.0
    %1034 = vmatprep.subr.mxu0 0.0
    %1035 = vmatpush1.msra.mxu0 0.0
    %1036 = vmatprep.subr.mxu0 0.0
    %1037 = vmatpush1.msra.mxu0 0.0
    %1038 = vmatprep.subr.mxu0 0.0
    %1039 = vmatpush1.msra.mxu0 0.0
    %1040 = vmatprep.subr.mxu0 0.0
    %1041 = vmatpush1.msra.mxu0 0.0
    %1042 = vmatprep.subr.mxu0 0.0
    %1043 = vmatpush1.msra.mxu0 0.0
    %1044 = vmatprep.subr.mxu0 0.0
    %1045 = vmatpush1.msra.mxu0 0.0
    %1046 = vmatprep.mubr.f32.mxu0 0.0
    %1047 = vmatmul.mubr.f32.gmra.mrb[0].mxu0 %v980
    %v1048 = vpop.f32.mrb[0].mxu0
    %v1049 = vadd.f32 1e-07, %v1048
    %v1050 = vpop.f32.mrb[0].mxu0
    %1051 = vdwg.mxu0
    %v1052 = vrsqrt.pop %v1049
    %v1054 = vsel %vm158, %v1052, 0
    %1056 = vmatprep.subr.mxu0 0.0
    %1057 = vmatpush1.msra.mxu0 %v168
    %1058 = vmatprep.subr.mxu0 0.0
    %1059 = vmatpush1.msra.mxu0 0.0
    %1060 = vmatprep.subr.mxu0 0.0
    %1061 = vmatpush1.msra.mxu0 0.0
    %1062 = vmatprep.subr.mxu0 0.0
    %1063 = vmatpush1.msra.mxu0 0.0
    %1064 = vmatprep.subr.mxu0 0.0
    %1065 = vmatpush1.msra.mxu0 0.0
    %1066 = vmatprep.subr.mxu0 0.0
    %1067 = vmatpush1.msra.mxu0 0.0
    %1068 = vmatprep.subr.mxu0 0.0
    %1069 = vmatpush1.msra.mxu0 0.0
    %1070 = vmatprep.subr.mxu0 0.0
    %1071 = vmatpush1.msra.mxu0 0.0
    %1072 = vmatprep.subr.mxu0 0.0
    %1073 = vmatpush1.msra.mxu0 0.0
    %1074 = vmatprep.subr.mxu0 0.0
    %1075 = vmatpush1.msra.mxu0 0.0
    %1076 = vmatprep.subr.mxu0 0.0
    %1077 = vmatpush1.msra.mxu0 0.0
    %1078 = vmatprep.subr.mxu0 0.0
    %1079 = vmatpush1.msra.mxu0 0.0
    %1080 = vmatprep.subr.mxu0 0.0
    %1081 = vmatpush1.msra.mxu0 0.0
    %1082 = vmatprep.subr.mxu0 0.0
    %1083 = vmatpush1.msra.mxu0 0.0
    %1084 = vmatprep.subr.mxu0 0.0
    %1085 = vmatpush1.msra.mxu0 0.0
    %1086 = vmatprep.subr.mxu0 0.0
    %1087 = vmatpush1.msra.mxu0 0.0
    %1088 = vmatprep.subr.mxu0 0.0
    %1089 = vmatpush1.msra.mxu0 0.0
    %1090 = vmatprep.subr.mxu0 0.0
    %1091 = vmatpush1.msra.mxu0 0.0
    %1092 = vmatprep.subr.mxu0 0.0
    %1093 = vmatpush1.msra.mxu0 0.0
    %1094 = vmatprep.subr.mxu0 0.0
    %1095 = vmatpush1.msra.mxu0 0.0
    %1096 = vmatprep.subr.mxu0 0.0
    %1097 = vmatpush1.msra.mxu0 0.0
    %1098 = vmatprep.subr.mxu0 0.0
    %1099 = vmatpush1.msra.mxu0 0.0
    %1100 = vmatprep.subr.mxu0 0.0
    %1101 = vmatpush1.msra.mxu0 0.0
    %1102 = vmatprep.subr.mxu0 0.0
    %1103 = vmatpush1.msra.mxu0 0.0
    %1104 = vmatprep.subr.mxu0 0.0
    %1105 = vmatpush1.msra.mxu0 0.0
    %1106 = vmatprep.subr.mxu0 0.0
    %1107 = vmatpush1.msra.mxu0 0.0
    %1108 = vmatprep.subr.mxu0 0.0
    %1109 = vmatpush1.msra.mxu0 0.0
    %1110 = vmatprep.subr.mxu0 0.0
    %1111 = vmatpush1.msra.mxu0 0.0
    %1112 = vmatprep.subr.mxu0 0.0
    %1113 = vmatpush1.msra.mxu0 0.0
    %1114 = vmatprep.subr.mxu0 0.0
    %1115 = vmatpush1.msra.mxu0 0.0
    %1116 = vmatprep.subr.mxu0 0.0
    %1117 = vmatpush1.msra.mxu0 0.0
    %1118 = vmatprep.subr.mxu0 0.0
    %1119 = vmatpush1.msra.mxu0 0.0
    %1120 = vmatprep.mubr.f32.mxu0 0.0
    %1121 = vmatmul.mubr.f32.gmra.mrb[0].mxu0 %v1054
    %v1122 = vpop.f32.mrb[0].mxu0
    %v1123 = vadd.f32 0.0, %v1122
    %v1124 = vpop.f32.mrb[0].mxu0
    %1125 = vdwg.mxu0
    %v1127 = vrot.slane %v1123, 1
    %v1130 = vmul.f32 %v969, %v1123
    %v1131 = vmul.f32 %v975, %v1127
    %v1132 = vld [vmem:[%s4] sm:$0x1]
    %v1133 = vld [vmem:[%s4 + $0x1] sm:$0x1]
    %v1134 = vld [vmem:[%s3] sm:$0xff]
    %v1135 = vld [vmem:[%s3 + $0x8] sm:$0xff]
    %v1136 = vld [vmem:[%s3 + $0x10] sm:$0xff]
    %v1137 = vld [vmem:[%s3 + $0x18] sm:$0xff]
    %v1138 = vld [vmem:[%s3 + $0x20] sm:$0xff]
    %v1139 = vld [vmem:[%s3 + $0x28] sm:$0xff]
    %v1140 = vld [vmem:[%s3 + $0x30] sm:$0xff]
    %v1141 = vld [vmem:[%s3 + $0x38] sm:$0xff]
    %v1142 = vld [vmem:[%s3 + $0x40] sm:$0xff]
    %v1143 = vld [vmem:[%s3 + $0x48] sm:$0xff]
    %v1144 = vld [vmem:[%s3 + $0x50] sm:$0xff]
    %v1145 = vld [vmem:[%s3 + $0x58] sm:$0xff]
    %v1146 = vld [vmem:[%s3 + $0x60] sm:$0xff]
    %v1147 = vld [vmem:[%s3 + $0x68] sm:$0xff]
    %v1148 = vld [vmem:[%s3 + $0x70] sm:$0xff]
    %v1149 = vld [vmem:[%s3 + $0x78] sm:$0xff]
    %v1150 = vlaneseq
    %v1151 = vshrl.u32 %v1150, 7
    %v1152 = vsub.s32 0, %v1151
    %v1153 = vrot.slane %v1132, %v1152
    %v1156 = vrot.slane %v1131, 7
    %v1157 = vsel %vm263, %v1156, %v1130
    %1159 = vmatprep.subr.mxu0 0.0
    %1160 = vmatpush1.msra.mxu0 %v1134
    %1161 = vmatprep.subr.mxu0 0.0
    %1162 = vmatpush1.msra.mxu0 %v1135
    %1163 = vmatprep.subr.mxu0 0.0
    %1164 = vmatpush1.msra.mxu0 %v1136
    %1165 = vmatprep.subr.mxu0 0.0
    %1166 = vmatpush1.msra.mxu0 %v1137
    %1167 = vmatprep.subr.mxu0 0.0
    %1168 = vmatpush1.msra.mxu0 %v1138
    %1169 = vmatprep.subr.mxu0 0.0
    %1170 = vmatpush1.msra.mxu0 %v1139
    %1171 = vmatprep.subr.mxu0 0.0
    %1172 = vmatpush1.msra.mxu0 %v1140
    %1173 = vmatprep.subr.mxu0 0.0
    %1174 = vmatpush1.msra.mxu0 %v1141
    %1175 = vmatprep.subr.mxu0 0.0
    %1176 = vmatpush1.msra.mxu0 %v1142
    %1177 = vmatprep.subr.mxu0 0.0
    %1178 = vmatpush1.msra.mxu0 %v1143
    %1179 = vmatprep.subr.mxu0 0.0
    %1180 = vmatpush1.msra.mxu0 %v1144
    %1181 = vmatprep.subr.mxu0 0.0
    %1182 = vmatpush1.msra.mxu0 %v1145
    %1183 = vmatprep.subr.mxu0 0.0
    %1184 = vmatpush1.msra.mxu0 %v1146
    %1185 = vmatprep.subr.mxu0 0.0
    %1186 = vmatpush1.msra.mxu0 %v1147
    %1187 = vmatprep.subr.mxu0 0.0
    %1188 = vmatpush1.msra.mxu0 %v1148
    %1189 = vmatprep.subr.mxu0 0.0
    %1190 = vmatpush1.msra.mxu0 %v1149
    %1191 = vmatprep.subr.mxu0 0.0
    %1192 = vmatpush1.msra.mxu0 0.0
    %1193 = vmatprep.subr.mxu0 0.0
    %1194 = vmatpush1.msra.mxu0 0.0
    %1195 = vmatprep.subr.mxu0 0.0
    %1196 = vmatpush1.msra.mxu0 0.0
    %1197 = vmatprep.subr.mxu0 0.0
    %1198 = vmatpush1.msra.mxu0 0.0
    %1199 = vmatprep.subr.mxu0 0.0
    %1200 = vmatpush1.msra.mxu0 0.0
    %1201 = vmatprep.subr.mxu0 0.0
    %1202 = vmatpush1.msra.mxu0 0.0
    %1203 = vmatprep.subr.mxu0 0.0
    %1204 = vmatpush1.msra.mxu0 0.0
    %1205 = vmatprep.subr.mxu0 0.0
    %1206 = vmatpush1.msra.mxu0 0.0
    %1207 = vmatprep.subr.mxu0 0.0
    %1208 = vmatpush1.msra.mxu0 0.0
    %1209 = vmatprep.subr.mxu0 0.0
    %1210 = vmatpush1.msra.mxu0 0.0
    %1211 = vmatprep.subr.mxu0 0.0
    %1212 = vmatpush1.msra.mxu0 0.0
    %1213 = vmatprep.subr.mxu0 0.0
    %1214 = vmatpush1.msra.mxu0 0.0
    %1215 = vmatprep.subr.mxu0 0.0
    %1216 = vmatpush1.msra.mxu0 0.0
    %1217 = vmatprep.subr.mxu0 0.0
    %1218 = vmatpush1.msra.mxu0 0.0
    %1219 = vmatprep.subr.mxu0 0.0
    %1220 = vmatpush1.msra.mxu0 0.0
    %1221 = vmatprep.subr.mxu0 0.0
    %1222 = vmatpush1.msra.mxu0 0.0
    %1223 = vmatprep.mubr.f32.mxu0 0.0
    %1224 = vmatmul.mubr.f32.gmra.mrb[0].mxu0 %v1157
    %v1225 = vpop.f32.mrb[0].mxu0
    %v1226 = vadd.f32 %v1153, %v1225
    %v1227 = vpop.f32.mrb[0].mxu0
    %1228 = vdwg.mxu0
    %v1229 = vlaneseq
    %v1230 = vand.u32 %v1229, 127
    %v1231 = vld [vmem:[%s1] sm:$0x3]
    %1232 = vset.pattern.permute.xlu0 0
    %1233 = vperm.xlu0 %1232, %v1231
    %v1234 = vpop.permute.xlu0 %1233
    %vm1235 = vcmp.eq.s32.totalorder %v1230, %v1234
    %v1236 = vsel %vm1235, 1, 0
    %v1237 = vcvt.s32.f32 %v1236
    %vm1238 = vcmask 1041408
    %v1239 = vsel %vm1238, %v1226, -inf
    %1240 = vmax.xlane.f32.xlu0 %v1239
    %v1241 = vpop.xlane.xlu0 %1240
    %v1242 = vsub.f32 %v1226, %v1241
    %v1243 = vmul.f32 %v1242, 1.442695
    %v1244 = vpow.pop %v1243
    %v1245 = vsel %vm1238, %v1244, 0.0
    %1246 = vadd.xlane.f32.xlu0 %v1245
    %v1247 = vpop.xlane.xlu0 %1246
    %v1248 = vlog2.pop %v1247
    %v1249 = vmul.f32 %v1248, 0.6931472
    %v1250 = vsub.f32 %v1242, %v1249
    %v1251 = vmul.f32 %v1250, %v1237
    %v1252 = vsel %vm1238, %v1251, 0.0
    %1253 = vadd.xlane.f32.xlu0 %v1252
    %v1254 = vpop.xlane.xlu0 %1253
    %v1255 = vmul.f32 %v1254, 1.442695
    %v1256 = vpow.pop %v1255
    %v1257 = vlaneseq
    %v1258 = vshrl.u32 %v1257, 7
    %v1259 = vsub.s32 0, %v1258
    %v1260 = vrot.slane %v1133, %v1259
    %v1261 = vmul.f32 %v1260, %v1237
    %v1262 = vsel %vm1238, %v1261, 0.0
    %1263 = vadd.xlane.f32.xlu0 %v1262
    %v1264 = vpop.xlane.xlu0 %1263
    %v1265 = vsub.f32 1.0, %v1256
    %v1266 = vsub.f32 0.0, %v1264
    %v1267 = vmul.f32 %v1266, %v1265
    %v1268 = vmul.f32 %v1267, %v1265
    %v1269 = vmul.f32 %v1268, %v1254
    %vm1270 = vcmp.eq.s32.totalorder %v1230, 127
    %v1271 = vsel %vm1270, %v1269, %v1226
    %1272 = vst [vmem:[#allocation7] sm:$0x3] %v1271
    // Predicated region
    $region38: #{tpu_custom_call.1} parent=1 // pred_check
      _
    $region39: #{tpu_custom_call.1} parent=1 // pred_check_branch
      %1274 = sbr.rel (0) target = $region41
    $region40: #{tpu_custom_call.1} parent=1 // pred_region
      %s1276 = ssub.s32 32, 32
      %1277 = vsyncadd [#allocation4], %s1276
      %s1279 = sshll.u32 [#allocation7], 4
      %s1280 = int_to_ptr.vmem [resolvable:$true] %s1279
      %1282 = dma.vmem_to_hbm [thread:$0]  %s1280, 32, %s7, [#allocation4]
    $region41: #{tpu_custom_call.1} parent=1 // pred_fallthru
      _
    // Predicated region
    $region42: #{tpu_custom_call.1} parent=1 // pred_check
      _
    $region43: #{tpu_custom_call.1} parent=1 // pred_check_branch
      %1284 = sbr.rel (0) target = $region45
    $region44: #{tpu_custom_call.1} parent=1 // pred_region
      %1285 = dma.done [#allocation4], 32
    $region45: #{tpu_custom_call.1} parent=1 // pred_fallthru
      _
    %1286 = vsyncpa [#allocation3], 1
    %1287 = vsyncpa [#allocation6], 1
    %1288 = vsyncpa [#allocation4], 1

</llo_original>
